<compile_context>
chip_gen: v7x
topology: tpu7x:2x2x1
jax: 0.10.0
libtpu: 0.0.40
codegen_flags: <defaults>
</compile_context>

<pallas_src>
import functools

import jax
import jax.numpy as jnp
from jax.experimental import pallas as pl
from jax.experimental.pallas import tpu as pltpu


def complex_attention_kernel(
    ids_sm,        # SMEM (B, S) int32   : token ids (scalar-prefetched)
    ids_ref,       # VMEM (1, 1, S) int32: ids of this batch row (pad mask)
    emb_ref,       # VMEM (V, E) f32     : embedding table (resident)
    kw1, kb1, kw2, kb2,        # key   MLP: (E,2E),(1,2E),(2E,E),(1,E)
    vw1, vb1, vw2, vb2,        # value MLP
    qw1, qb1, qw2, qb2,        # query MLP
    mw1, mb1, mw2, mb2,        # head  MLP: (E,E//2),(1,E//2),(E//2,O_PAD),(1,O_PAD)
    logits_ref,    # VMEM (1, 1, O_PAD) f32
    alpha_ref,     # VMEM (1, 1, S) f32
    x_scr,         # VMEM scratch (S, E) f32 : gathered embeddings
    *, pad_idx):
    b = pl.program_id(0)
    S = x_scr.shape[0]

    # ---- fused embedding gather: ids read from SMEM, table resident in VMEM ----
    # TODO(synk): for large vocabularies the (V, E) table will not fit in VMEM; keep it
    # in HBM (memory_space=pl.ANY) and DMA the needed rows with pltpu.make_async_copy.
    @pl.loop(0, S)
    def _(s):
        tok = ids_sm[b, s]
        x_scr[pl.ds(s, 1), :] = emb_ref[pl.ds(tok, 1), :]

    x = x_scr[...]                                                   # (S, E)

    def mlp(h, w1_ref, b1_ref, w2_ref, b2_ref):
        a = jnp.dot(h, w1_ref[...], preferred_element_type=jnp.float32) + b1_ref[...]
        a = jnp.maximum(a, 0.0)                                      # ReLU
        return jnp.dot(a, w2_ref[...], preferred_element_type=jnp.float32) + b2_ref[...]

    k = mlp(x, kw1, kb1, kw2, kb2)                                   # (S, E)
    v = mlp(x, vw1, vb1, vw2, vb2)                                   # (S, E)

    k_mean = jnp.sum(k, axis=0, keepdims=True) * (1.0 / S)           # (1, E) == k.mean(dim=1)
    q = mlp(k_mean, qw1, qb1, qw2, qb2)                              # (1, E)

    # scores: qx[s] = <k[s, :], q>   -> MXU
    qx = jnp.dot(q, k.T, preferred_element_type=jnp.float32)         # (1, S)

    ids_row = ids_ref[0]                                             # (1, S) int32
    masked = jnp.where(ids_row == pad_idx, -jnp.inf, qx)             # mask pad positions
    m = jnp.max(masked, axis=-1, keepdims=True)
    ex = jnp.exp(masked - m)
    alpha = ex / jnp.sum(ex, axis=-1, keepdims=True)                 # softmax over seq
    alpha_ref[0] = alpha

    z = jnp.dot(alpha, v, preferred_element_type=jnp.float32)        # (1, E) = sum_s a_s * v_s
    logits_ref[0] = mlp(z, mw1, mb1, mw2, mb2)                       # (1, O_PAD)


def prepare_params(torch_params, o_pad=128):
    """One-time hoisted prep: transpose nn.Linear weights to (in, out), reshape biases
    to (1, n), zero-pad the final layer to o_pad lanes (lane-dense output store)."""
    (kw1, kb1, kw2, kb2, vw1, vb1, vw2, vb2,
     qw1, qb1, qw2, qb2, mw1, mb1, mw2, mb2) = torch_params

    def t(w):
        return jnp.asarray(w, jnp.float32).T

    def b_(b):
        return jnp.asarray(b, jnp.float32).reshape(1, -1)

    out_dim, h = mw2.shape
    mw2_p = jnp.zeros((h, o_pad), jnp.float32).at[:, :out_dim].set(t(mw2))
    mb2_p = jnp.zeros((1, o_pad), jnp.float32).at[:, :out_dim].set(b_(mb2))
    return (t(kw1), b_(kb1), t(kw2), b_(kb2),
            t(vw1), b_(vb1), t(vw2), b_(vb2),
            t(qw1), b_(qb1), t(qw2), b_(qb2),
            t(mw1), b_(mb1), mw2_p, mb2_p)


def complex_attention_forward(x, embeddings, params, *, output_dim, pad_idx):
    """Matches ComplexAttention.forward: returns (logits (B,O), alpha (B,S))."""
    (kw1, kb1, kw2, kb2, vw1, vb1, vw2, vb2,
     qw1, qb1, qw2, qb2, mw1, mb1, mw2p, mb2p) = params
    B, S = x.shape
    V, E = embeddings.shape
    H2 = kw1.shape[1]
    H = mw1.shape[1]
    O_PAD = mw2p.shape[1]

    ids = x.astype(jnp.int32)
    ids3 = ids.reshape(B, 1, S)

    def per_row(i, ids_sm):     # blocks indexed by batch row
        return (i, 0, 0)

    def resident(i, ids_sm):    # weights / table stay put across the grid
        return (0, 0)

    weight_specs = [pl.BlockSpec(p.shape, resident) for p in params]
    in_specs = ([pl.BlockSpec((1, 1, S), per_row),        # ids (pad mask)
                 pl.BlockSpec((V, E), resident)]          # embedding table
                + weight_specs)
    out_specs = [pl.BlockSpec((1, 1, O_PAD), per_row),
                 pl.BlockSpec((1, 1, S), per_row)]
    out_shape = (jax.ShapeDtypeStruct((B, 1, O_PAD), jnp.float32),
                 jax.ShapeDtypeStruct((B, 1, S), jnp.float32))

    flops = B * (8 * S * E * H2            # key + value MLPs
                 + 4 * E * H2              # query MLP
                 + 2 * S * E               # q . k^T
                 + 2 * S * E               # alpha @ v
                 + 2 * E * H + 2 * H * O_PAD)   # head MLP
    param_bytes = 4 * sum(int(p.size) for p in params)
    bytes_accessed = int(8 * B * S + 4 * V * E + param_bytes + 4 * B * (O_PAD + S))

    kernel = functools.partial(complex_attention_kernel, pad_idx=pad_idx)

    logits_pad, alpha3 = pl.pallas_call(
        kernel,
        out_shape=out_shape,
        grid_spec=pltpu.PrefetchScalarGridSpec(
            num_scalar_prefetch=1,               # ids -> SMEM for the fused gather
            grid=(B,),
            in_specs=in_specs,
            out_specs=out_specs,
            scratch_shapes=[pltpu.VMEM((S, E), jnp.float32)]),
        compiler_params=pltpu.CompilerParams(
            dimension_semantics=("parallel",),   # batch rows independent (megacore on v7x)
            vmem_limit_bytes=32 * 1024 * 1024),  # explicit; fits v5e/v6e/v7x
        cost_estimate=pl.CostEstimate(
            flops=int(flops), transcendentals=int(B * S),
            bytes_accessed=bytes_accessed),
    )(ids, ids3, embeddings.astype(jnp.float32), *params)

    logits = logits_pad.reshape(B, O_PAD)[:, :output_dim]
    alpha = alpha3.reshape(B, S)
    return logits, alpha


def _reference_forward(x, embeddings, torch_params, pad_idx):
    """Pure-JAX reference mirroring the PyTorch ComplexAttention.forward."""
    (kw1, kb1, kw2, kb2, vw1, vb1, vw2, vb2,
     qw1, qb1, qw2, qb2, mw1, mb1, mw2, mb2) = torch_params

    def mlp(h, w1, b1, w2, b2):
        a = jnp.maximum(jnp.matmul(h, w1.T, precision="highest") + b1, 0.0)
        return jnp.matmul(a, w2.T, precision="highest") + b2

    x_emb = jnp.take(embeddings, x, axis=0)                      # (B, S, E)
    k = mlp(x_emb, kw1, kb1, kw2, kb2)                           # (B, S, E)
    v = mlp(x_emb, vw1, vb1, vw2, vb2)                           # (B, S, E)
    q = mlp(jnp.mean(k, axis=1), qw1, qb1, qw2, qb2)             # (B, E)
    qx = jnp.einsum("bse,be->bs", k, q, precision="highest")     # (B, S)
    scores = jnp.where(x == pad_idx, -jnp.inf, qx)
    alpha = jax.nn.softmax(scores, axis=1)                       # (B, S)
    z = jnp.einsum("bs,bse->be", alpha, v, precision="highest")  # (B, E)
    logits = mlp(z, mw1, mb1, mw2, mb2)                          # (B, O)
    return logits, alpha


if __name__ == "__main__":
    B, S = 8, 8          # batch, sequence length
    V, E = 32, 32        # vocab size, embedding_dim
    O = 4                # output_dim
    pad_idx = 0
    H2, H = 2 * E, E // 2

    root = jax.random.PRNGKey(0)
    keys = jax.random.split(root, 18)

    def linear(kw, kb, out_d, in_d):
        return (0.1 * jax.random.normal(kw, (out_d, in_d), jnp.float32),
                0.1 * jax.random.normal(kb, (out_d,), jnp.float32))

    embeddings = jax.random.normal(keys[0], (V, E), jnp.float32)   # "pretrained", frozen
    kw1, kb1 = linear(keys[1], keys[2], H2, E)
    kw2, kb2 = linear(keys[3], keys[4], E, H2)
    vw1, vb1 = linear(keys[5], keys[6], H2, E)
    vw2, vb2 = linear(keys[7], keys[8], E, H2)
    qw1, qb1 = linear(keys[9], keys[10], H2, E)
    qw2, qb2 = linear(keys[11], keys[12], E, H2)
    mw1, mb1 = linear(keys[13], keys[14], H, E)
    mw2, mb2 = linear(keys[15], keys[16], O, H)
    torch_params = (kw1, kb1, kw2, kb2, vw1, vb1, vw2, vb2,
                    qw1, qb1, qw2, qb2, mw1, mb1, mw2, mb2)

    x = jax.random.randint(keys[17], (B, S), 1, V, dtype=jnp.int32)
    x = x.at[:, -2:].set(pad_idx)        # exercise the pad mask

    params = prepare_params(torch_params)   # hoisted: transpose / reshape / pad ONCE

    fwd = jax.jit(functools.partial(
        complex_attention_forward, output_dim=O, pad_idx=pad_idx))
    logits, alpha = jax.block_until_ready(fwd(x, embeddings, params))

    assert logits.shape == (B, O) and logits.dtype == jnp.float32
    assert alpha.shape == (B, S) and alpha.dtype == jnp.float32
    assert not bool(jnp.any(jnp.isnan(logits)))
    assert not bool(jnp.any(jnp.isnan(alpha)))

    ref_logits, ref_alpha = _reference_forward(x, embeddings, torch_params, pad_idx)
    assert jnp.allclose(alpha.sum(axis=1), 1.0, atol=1e-5)       # softmax normalization
    assert jnp.allclose(alpha[:, -2:], 0.0, atol=1e-6)           # pads get zero attention
    assert jnp.allclose(alpha, ref_alpha, atol=1e-2, rtol=1e-2)
    assert jnp.allclose(logits, ref_logits, atol=1e-2, rtol=1e-2)

    print("KERNEL_OK")
</pallas_src>

<mosaic_0001>
module attributes {stable_mosaic.version = 11 : i64} {
  func.func @complex_attention_kernel(%arg0: i32, %arg1: memref<8x8xi32, #tpu.memory_space<smem>>, %arg2: memref<1x1x8xi32, #tpu.memory_space<vmem>>, %arg3: memref<32x32xf32, #tpu.memory_space<vmem>>, %arg4: memref<32x64xf32, #tpu.memory_space<vmem>>, %arg5: memref<1x64xf32, #tpu.memory_space<vmem>>, %arg6: memref<64x32xf32, #tpu.memory_space<vmem>>, %arg7: memref<1x32xf32, #tpu.memory_space<vmem>>, %arg8: memref<32x64xf32, #tpu.memory_space<vmem>>, %arg9: memref<1x64xf32, #tpu.memory_space<vmem>>, %arg10: memref<64x32xf32, #tpu.memory_space<vmem>>, %arg11: memref<1x32xf32, #tpu.memory_space<vmem>>, %arg12: memref<32x64xf32, #tpu.memory_space<vmem>>, %arg13: memref<1x64xf32, #tpu.memory_space<vmem>>, %arg14: memref<64x32xf32, #tpu.memory_space<vmem>>, %arg15: memref<1x32xf32, #tpu.memory_space<vmem>>, %arg16: memref<32x16xf32, #tpu.memory_space<vmem>>, %arg17: memref<1x16xf32, #tpu.memory_space<vmem>>, %arg18: memref<16x128xf32, #tpu.memory_space<vmem>>, %arg19: memref<1x128xf32, #tpu.memory_space<vmem>>, %arg20: memref<1x1x128xf32, #tpu.memory_space<vmem>>, %arg21: memref<1x1x8xf32, #tpu.memory_space<vmem>>, %arg22: memref<8x32xf32, #tpu.memory_space<vmem>>) attributes {dimension_semantics = [#tpu.dimension_semantics<parallel>], iteration_bounds = array<i64: 8>, scalar_prefetch = 1 : i64, scratch_operands = 1 : i64, tpu.core_type = #tpu.core_type<tc>, window_params = [{transform_indices = @transform_0, window_bounds = array<i64: 1, 1, 8>}, {pipeline_mode = #tpu.pipeline_mode<synchronous>, transform_indices = @transform_1, window_bounds = array<i64: 32, 32>}, {pipeline_mode = #tpu.pipeline_mode<synchronous>, transform_indices = @transform_2, window_bounds = array<i64: 32, 64>}, {pipeline_mode = #tpu.pipeline_mode<synchronous>, transform_indices = @transform_3, window_bounds = array<i64: 1, 64>}, {pipeline_mode = #tpu.pipeline_mode<synchronous>, transform_indices = @transform_4, window_bounds = array<i64: 64, 32>}, {pipeline_mode = #tpu.pipeline_mode<synchronous>, transform_indices = @transform_5, window_bounds = array<i64: 1, 32>}, {pipeline_mode = #tpu.pipeline_mode<synchronous>, transform_indices = @transform_6, window_bounds = array<i64: 32, 64>}, {pipeline_mode = #tpu.pipeline_mode<synchronous>, transform_indices = @transform_7, window_bounds = array<i64: 1, 64>}, {pipeline_mode = #tpu.pipeline_mode<synchronous>, transform_indices = @transform_8, window_bounds = array<i64: 64, 32>}, {pipeline_mode = #tpu.pipeline_mode<synchronous>, transform_indices = @transform_9, window_bounds = array<i64: 1, 32>}, {pipeline_mode = #tpu.pipeline_mode<synchronous>, transform_indices = @transform_10, window_bounds = array<i64: 32, 64>}, {pipeline_mode = #tpu.pipeline_mode<synchronous>, transform_indices = @transform_11, window_bounds = array<i64: 1, 64>}, {pipeline_mode = #tpu.pipeline_mode<synchronous>, transform_indices = @transform_12, window_bounds = array<i64: 64, 32>}, {pipeline_mode = #tpu.pipeline_mode<synchronous>, transform_indices = @transform_13, window_bounds = array<i64: 1, 32>}, {pipeline_mode = #tpu.pipeline_mode<synchronous>, transform_indices = @transform_14, window_bounds = array<i64: 32, 16>}, {pipeline_mode = #tpu.pipeline_mode<synchronous>, transform_indices = @transform_15, window_bounds = array<i64: 1, 16>}, {pipeline_mode = #tpu.pipeline_mode<synchronous>, transform_indices = @transform_16, window_bounds = array<i64: 16, 128>}, {pipeline_mode = #tpu.pipeline_mode<synchronous>, transform_indices = @transform_17, window_bounds = array<i64: 1, 128>}, {transform_indices = @transform_18, window_bounds = array<i64: 1, 1, 128>}, {transform_indices = @transform_19, window_bounds = array<i64: 1, 1, 8>}]} {
    %c0_i32 = arith.constant 0 : i32
    %c8_i32 = arith.constant 8 : i32
    %0 = arith.addi %c0_i32, %c8_i32 : i32
    %c1_i32 = arith.constant 1 : i32
    scf.for %arg23 = %c0_i32 to %0 step %c1_i32  : i32 {
      %c1_i32_62 = arith.constant 1 : i32
      %74 = arith.muli %arg23, %c1_i32_62 : i32
      %c0_i32_63 = arith.constant 0 : i32
      %75 = arith.addi %c0_i32_63, %74 : i32
      %76 = arith.index_cast %arg0 : i32 to index
      %77 = arith.index_cast %75 : i32 to index
      %78 = memref.load %arg1[%76, %77] : memref<8x8xi32, #tpu.memory_space<smem>>
      %79 = arith.index_cast %78 : i32 to index
      %c0_64 = arith.constant 0 : index
      %80 = vector.load %arg3[%79, %c0_64] : memref<32x32xf32, #tpu.memory_space<vmem>>, vector<1x32xf32>
      %81 = arith.index_cast %75 : i32 to index
      %c0_65 = arith.constant 0 : index
      %82 = vector.load %arg22[%81, %c0_65] : memref<8x32xf32, #tpu.memory_space<vmem>>, vector<1x32xf32>
      tpu.vector_store %arg22[%81, %c0_65], %80 {strides = array<i32>} : memref<8x32xf32, #tpu.memory_space<vmem>>, vector<1x32xf32>,
    }
    %c8_i32_0 = arith.constant 8 : i32
    %c0 = arith.constant 0 : index
    %c0_1 = arith.constant 0 : index
    %1 = vector.load %arg22[%c0, %c0_1] : memref<8x32xf32, #tpu.memory_space<vmem>>, vector<8x32xf32>
    %c0_2 = arith.constant 0 : index
    %c0_3 = arith.constant 0 : index
    %2 = vector.load %arg4[%c0_2, %c0_3] : memref<32x64xf32, #tpu.memory_space<vmem>>, vector<32x64xf32>
    %cst = arith.constant dense<0.000000e+00> : vector<8x64xf32>
    %3 = tpu.matmul %1, %2, %cst {dimension_numbers = #tpu.dot_dimension_numbers<[1], [0], [0], [1], [0, 0, 1, 1], [], []>} : vector<8x32xf32>, vector<32x64xf32>, vector<8x64xf32> -> vector<8x64xf32>
    %c0_4 = arith.constant 0 : index
    %c0_5 = arith.constant 0 : index
    %4 = vector.load %arg5[%c0_4, %c0_5] : memref<1x64xf32, #tpu.memory_space<vmem>>, vector<1x64xf32>
    %5 = vector.broadcast %4 : vector<1x64xf32> to vector<8x64xf32>
    %6 = arith.addf %3, %5 : vector<8x64xf32>
    %cst_6 = arith.constant 0.000000e+00 : f32
    %7 = vector.broadcast %cst_6 : f32 to vector<8x64xf32>
    %8 = arith.maximumf %6, %7 : vector<8x64xf32>
    %c0_7 = arith.constant 0 : index
    %c0_8 = arith.constant 0 : index
    %9 = vector.load %arg6[%c0_7, %c0_8] : memref<64x32xf32, #tpu.memory_space<vmem>>, vector<64x32xf32>
    %cst_9 = arith.constant dense<0.000000e+00> : vector<8x32xf32>
    %10 = tpu.matmul %8, %9, %cst_9 {dimension_numbers = #tpu.dot_dimension_numbers<[1], [0], [0], [1], [0, 0, 1, 1], [], []>} : vector<8x64xf32>, vector<64x32xf32>, vector<8x32xf32> -> vector<8x32xf32>
    %c0_10 = arith.constant 0 : index
    %c0_11 = arith.constant 0 : index
    %11 = vector.load %arg7[%c0_10, %c0_11] : memref<1x32xf32, #tpu.memory_space<vmem>>, vector<1x32xf32>
    %12 = vector.broadcast %11 : vector<1x32xf32> to vector<8x32xf32>
    %13 = arith.addf %10, %12 : vector<8x32xf32>
    %c0_12 = arith.constant 0 : index
    %c0_13 = arith.constant 0 : index
    %14 = vector.load %arg8[%c0_12, %c0_13] : memref<32x64xf32, #tpu.memory_space<vmem>>, vector<32x64xf32>
    %cst_14 = arith.constant dense<0.000000e+00> : vector<8x64xf32>
    %15 = tpu.matmul %1, %14, %cst_14 {dimension_numbers = #tpu.dot_dimension_numbers<[1], [0], [0], [1], [0, 0, 1, 1], [], []>} : vector<8x32xf32>, vector<32x64xf32>, vector<8x64xf32> -> vector<8x64xf32>
    %c0_15 = arith.constant 0 : index
    %c0_16 = arith.constant 0 : index
    %16 = vector.load %arg9[%c0_15, %c0_16] : memref<1x64xf32, #tpu.memory_space<vmem>>, vector<1x64xf32>
    %17 = vector.broadcast %16 : vector<1x64xf32> to vector<8x64xf32>
    %18 = arith.addf %15, %17 : vector<8x64xf32>
    %cst_17 = arith.constant 0.000000e+00 : f32
    %19 = vector.broadcast %cst_17 : f32 to vector<8x64xf32>
    %20 = arith.maximumf %18, %19 : vector<8x64xf32>
    %c0_18 = arith.constant 0 : index
    %c0_19 = arith.constant 0 : index
    %21 = vector.load %arg10[%c0_18, %c0_19] : memref<64x32xf32, #tpu.memory_space<vmem>>, vector<64x32xf32>
    %cst_20 = arith.constant dense<0.000000e+00> : vector<8x32xf32>
    %22 = tpu.matmul %20, %21, %cst_20 {dimension_numbers = #tpu.dot_dimension_numbers<[1], [0], [0], [1], [0, 0, 1, 1], [], []>} : vector<8x64xf32>, vector<64x32xf32>, vector<8x32xf32> -> vector<8x32xf32>
    %c0_21 = arith.constant 0 : index
    %c0_22 = arith.constant 0 : index
    %23 = vector.load %arg11[%c0_21, %c0_22] : memref<1x32xf32, #tpu.memory_space<vmem>>, vector<1x32xf32>
    %24 = vector.broadcast %23 : vector<1x32xf32> to vector<8x32xf32>
    %25 = arith.addf %22, %24 : vector<8x32xf32>
    %cst_23 = arith.constant dense<0.000000e+00> : vector<32xf32>
    %26 = vector.multi_reduction <add>, %13, %cst_23 [0] : vector<8x32xf32> to vector<32xf32>
    %27 = vector.shape_cast %26 : vector<32xf32> to vector<1x32xf32>
    %cst_24 = arith.constant 1.250000e-01 : f32
    %28 = vector.broadcast %cst_24 : f32 to vector<1x32xf32>
    %29 = arith.mulf %27, %28 : vector<1x32xf32>
    %c0_25 = arith.constant 0 : index
    %c0_26 = arith.constant 0 : index
    %30 = vector.load %arg12[%c0_25, %c0_26] : memref<32x64xf32, #tpu.memory_space<vmem>>, vector<32x64xf32>
    %cst_27 = arith.constant dense<0.000000e+00> : vector<1x64xf32>
    %31 = tpu.matmul %29, %30, %cst_27 {dimension_numbers = #tpu.dot_dimension_numbers<[1], [0], [0], [1], [0, 0, 1, 1], [], []>} : vector<1x32xf32>, vector<32x64xf32>, vector<1x64xf32> -> vector<1x64xf32>
    %c0_28 = arith.constant 0 : index
    %c0_29 = arith.constant 0 : index
    %32 = vector.load %arg13[%c0_28, %c0_29] : memref<1x64xf32, #tpu.memory_space<vmem>>, vector<1x64xf32>
    %33 = arith.addf %31, %32 : vector<1x64xf32>
    %cst_30 = arith.constant 0.000000e+00 : f32
    %34 = vector.broadcast %cst_30 : f32 to vector<1x64xf32>
    %35 = arith.maximumf %33, %34 : vector<1x64xf32>
    %c0_31 = arith.constant 0 : index
    %c0_32 = arith.constant 0 : index
    %36 = vector.load %arg14[%c0_31, %c0_32] : memref<64x32xf32, #tpu.memory_space<vmem>>, vector<64x32xf32>
    %cst_33 = arith.constant dense<0.000000e+00> : vector<1x32xf32>
    %37 = tpu.matmul %35, %36, %cst_33 {dimension_numbers = #tpu.dot_dimension_numbers<[1], [0], [0], [1], [0, 0, 1, 1], [], []>} : vector<1x64xf32>, vector<64x32xf32>, vector<1x32xf32> -> vector<1x32xf32>
    %c0_34 = arith.constant 0 : index
    %c0_35 = arith.constant 0 : index
    %38 = vector.load %arg15[%c0_34, %c0_35] : memref<1x32xf32, #tpu.memory_space<vmem>>, vector<1x32xf32>
    %39 = arith.addf %37, %38 : vector<1x32xf32>
    %40 = tpu.transpose %13, [1, 0] : vector<8x32xf32> -> vector<32x8xf32>
    %cst_36 = arith.constant dense<0.000000e+00> : vector<1x8xf32>
    %41 = tpu.matmul %39, %40, %cst_36 {dimension_numbers = #tpu.dot_dimension_numbers<[1], [0], [0], [1], [0, 0, 1, 1], [], []>} : vector<1x32xf32>, vector<32x8xf32>, vector<1x8xf32> -> vector<1x8xf32>
    %c0_37 = arith.constant 0 : index
    %c0_38 = arith.constant 0 : index
    %c0_39 = arith.constant 0 : index
    %42 = vector.load %arg2[%c0_37, %c0_38, %c0_39] : memref<1x1x8xi32, #tpu.memory_space<vmem>>, vector<1x1x8xi32>
    %43 = vector.shape_cast %42 : vector<1x1x8xi32> to vector<1x8xi32>
    %c0_i32_40 = arith.constant 0 : i32
    %44 = vector.broadcast %c0_i32_40 : i32 to vector<1x8xi32>
    %45 = arith.cmpi eq, %43, %44 : vector<1x8xi32>
    %cst_41 = arith.constant 0xFF800000 : f32
    %46 = vector.broadcast %cst_41 : f32 to vector<1x8xf32>
    %47 = arith.select %45, %46, %41 : vector<1x8xi1>, vector<1x8xf32>
    %cst_42 = arith.constant dense<0xFF800000> : vector<1xf32>
    %48 = vector.multi_reduction <maximumf>, %47, %cst_42 [1] : vector<1x8xf32> to vector<1xf32>
    %49 = vector.shape_cast %48 : vector<1xf32> to vector<1x1xf32>
    %50 = vector.broadcast %49 : vector<1x1xf32> to vector<1x8xf32>
    %51 = arith.subf %47, %50 : vector<1x8xf32>
    %52 = math.exp %51 : vector<1x8xf32>
    %cst_43 = arith.constant dense<0.000000e+00> : vector<1xf32>
    %53 = vector.multi_reduction <add>, %52, %cst_43 [1] : vector<1x8xf32> to vector<1xf32>
    %54 = vector.shape_cast %53 : vector<1xf32> to vector<1x1xf32>
    %55 = vector.broadcast %54 : vector<1x1xf32> to vector<1x8xf32>
    %56 = arith.divf %52, %55 : vector<1x8xf32>
    %c0_44 = arith.constant 0 : index
    %c0_45 = arith.constant 0 : index
    %c0_46 = arith.constant 0 : index
    %57 = vector.load %arg21[%c0_44, %c0_45, %c0_46] : memref<1x1x8xf32, #tpu.memory_space<vmem>>, vector<1x1x8xf32>
    %58 = vector.shape_cast %57 : vector<1x1x8xf32> to vector<1x8xf32>
    %59 = vector.shape_cast %56 : vector<1x8xf32> to vector<1x1x8xf32>
    tpu.vector_store %arg21[%c0_44, %c0_45, %c0_46], %59 {strides = array<i32>} : memref<1x1x8xf32, #tpu.memory_space<vmem>>, vector<1x1x8xf32>,
    %cst_47 = arith.constant dense<0.000000e+00> : vector<1x32xf32>
    %60 = tpu.matmul %56, %25, %cst_47 {dimension_numbers = #tpu.dot_dimension_numbers<[1], [0], [0], [1], [0, 0, 1, 1], [], []>} : vector<1x8xf32>, vector<8x32xf32>, vector<1x32xf32> -> vector<1x32xf32>
    %c0_48 = arith.constant 0 : index
    %c0_49 = arith.constant 0 : index
    %61 = vector.load %arg16[%c0_48, %c0_49] : memref<32x16xf32, #tpu.memory_space<vmem>>, vector<32x16xf32>
    %cst_50 = arith.constant dense<0.000000e+00> : vector<1x16xf32>
    %62 = tpu.matmul %60, %61, %cst_50 {dimension_numbers = #tpu.dot_dimension_numbers<[1], [0], [0], [1], [0, 0, 1, 1], [], []>} : vector<1x32xf32>, vector<32x16xf32>, vector<1x16xf32> -> vector<1x16xf32>
    %c0_51 = arith.constant 0 : index
    %c0_52 = arith.constant 0 : index
    %63 = vector.load %arg17[%c0_51, %c0_52] : memref<1x16xf32, #tpu.memory_space<vmem>>, vector<1x16xf32>
    %64 = arith.addf %62, %63 : vector<1x16xf32>
    %cst_53 = arith.constant 0.000000e+00 : f32
    %65 = vector.broadcast %cst_53 : f32 to vector<1x16xf32>
    %66 = arith.maximumf %64, %65 : vector<1x16xf32>
    %c0_54 = arith.constant 0 : index
    %c0_55 = arith.constant 0 : index
    %67 = vector.load %arg18[%c0_54, %c0_55] : memref<16x128xf32, #tpu.memory_space<vmem>>, vector<16x128xf32>
    %cst_56 = arith.constant dense<0.000000e+00> : vector<1x128xf32>
    %68 = tpu.matmul %66, %67, %cst_56 {dimension_numbers = #tpu.dot_dimension_numbers<[1], [0], [0], [1], [0, 0, 1, 1], [], []>} : vector<1x16xf32>, vector<16x128xf32>, vector<1x128xf32> -> vector<1x128xf32>
    %c0_57 = arith.constant 0 : index
    %c0_58 = arith.constant 0 : index
    %69 = vector.load %arg19[%c0_57, %c0_58] : memref<1x128xf32, #tpu.memory_space<vmem>>, vector<1x128xf32>
    %70 = arith.addf %68, %69 : vector<1x128xf32>
    %c0_59 = arith.constant 0 : index
    %c0_60 = arith.constant 0 : index
    %c0_61 = arith.constant 0 : index
    %71 = vector.load %arg20[%c0_59, %c0_60, %c0_61] : memref<1x1x128xf32, #tpu.memory_space<vmem>>, vector<1x1x128xf32>
    %72 = vector.shape_cast %71 : vector<1x1x128xf32> to vector<1x128xf32>
    %73 = vector.shape_cast %70 : vector<1x128xf32> to vector<1x1x128xf32>
    tpu.vector_store %arg20[%c0_59, %c0_60, %c0_61], %73 {strides = array<i32>} : memref<1x1x128xf32, #tpu.memory_space<vmem>>, vector<1x1x128xf32>,
    return
  }
  func.func @transform_0(%arg0: i32, %arg1: memref<8x8xi32, #tpu.memory_space<smem>>) -> (i32, i32, i32) {
    %c0_i32 = arith.constant 0 : i32
    %c0_i32_0 = arith.constant 0 : i32
    %c0_i32_1 = arith.constant 0 : i32
    return %arg0, %c0_i32, %c0_i32_0 : i32, i32, i32
  }
  func.func @transform_1(%arg0: i32, %arg1: memref<8x8xi32, #tpu.memory_space<smem>>) -> (i32, i32) {
    %c0_i32 = arith.constant 0 : i32
    %c0_i32_0 = arith.constant 0 : i32
    %c0_i32_1 = arith.constant 0 : i32
    return %c0_i32, %c0_i32_0 : i32, i32
  }
  func.func @transform_2(%arg0: i32, %arg1: memref<8x8xi32, #tpu.memory_space<smem>>) -> (i32, i32) {
    %c0_i32 = arith.constant 0 : i32
    %c0_i32_0 = arith.constant 0 : i32
    %c0_i32_1 = arith.constant 0 : i32
    return %c0_i32, %c0_i32_0 : i32, i32
  }
  func.func @transform_3(%arg0: i32, %arg1: memref<8x8xi32, #tpu.memory_space<smem>>) -> (i32, i32) {
    %c0_i32 = arith.constant 0 : i32
    %c0_i32_0 = arith.constant 0 : i32
    %c0_i32_1 = arith.constant 0 : i32
    return %c0_i32, %c0_i32_0 : i32, i32
  }
  func.func @transform_4(%arg0: i32, %arg1: memref<8x8xi32, #tpu.memory_space<smem>>) -> (i32, i32) {
    %c0_i32 = arith.constant 0 : i32
    %c0_i32_0 = arith.constant 0 : i32
    %c0_i32_1 = arith.constant 0 : i32
    return %c0_i32, %c0_i32_0 : i32, i32
  }
  func.func @transform_5(%arg0: i32, %arg1: memref<8x8xi32, #tpu.memory_space<smem>>) -> (i32, i32) {
    %c0_i32 = arith.constant 0 : i32
    %c0_i32_0 = arith.constant 0 : i32
    %c0_i32_1 = arith.constant 0 : i32
    return %c0_i32, %c0_i32_0 : i32, i32
  }
  func.func @transform_6(%arg0: i32, %arg1: memref<8x8xi32, #tpu.memory_space<smem>>) -> (i32, i32) {
    %c0_i32 = arith.constant 0 : i32
    %c0_i32_0 = arith.constant 0 : i32
    %c0_i32_1 = arith.constant 0 : i32
    return %c0_i32, %c0_i32_0 : i32, i32
  }
  func.func @transform_7(%arg0: i32, %arg1: memref<8x8xi32, #tpu.memory_space<smem>>) -> (i32, i32) {
    %c0_i32 = arith.constant 0 : i32
    %c0_i32_0 = arith.constant 0 : i32
    %c0_i32_1 = arith.constant 0 : i32
    return %c0_i32, %c0_i32_0 : i32, i32
  }
  func.func @transform_8(%arg0: i32, %arg1: memref<8x8xi32, #tpu.memory_space<smem>>) -> (i32, i32) {
    %c0_i32 = arith.constant 0 : i32
    %c0_i32_0 = arith.constant 0 : i32
    %c0_i32_1 = arith.constant 0 : i32
    return %c0_i32, %c0_i32_0 : i32, i32
  }
  func.func @transform_9(%arg0: i32, %arg1: memref<8x8xi32, #tpu.memory_space<smem>>) -> (i32, i32) {
    %c0_i32 = arith.constant 0 : i32
    %c0_i32_0 = arith.constant 0 : i32
    %c0_i32_1 = arith.constant 0 : i32
    return %c0_i32, %c0_i32_0 : i32, i32
  }
  func.func @transform_10(%arg0: i32, %arg1: memref<8x8xi32, #tpu.memory_space<smem>>) -> (i32, i32) {
    %c0_i32 = arith.constant 0 : i32
    %c0_i32_0 = arith.constant 0 : i32
    %c0_i32_1 = arith.constant 0 : i32
    return %c0_i32, %c0_i32_0 : i32, i32
  }
  func.func @transform_11(%arg0: i32, %arg1: memref<8x8xi32, #tpu.memory_space<smem>>) -> (i32, i32) {
    %c0_i32 = arith.constant 0 : i32
    %c0_i32_0 = arith.constant 0 : i32
    %c0_i32_1 = arith.constant 0 : i32
    return %c0_i32, %c0_i32_0 : i32, i32
  }
  func.func @transform_12(%arg0: i32, %arg1: memref<8x8xi32, #tpu.memory_space<smem>>) -> (i32, i32) {
    %c0_i32 = arith.constant 0 : i32
    %c0_i32_0 = arith.constant 0 : i32
    %c0_i32_1 = arith.constant 0 : i32
    return %c0_i32, %c0_i32_0 : i32, i32
  }
  func.func @transform_13(%arg0: i32, %arg1: memref<8x8xi32, #tpu.memory_space<smem>>) -> (i32, i32) {
    %c0_i32 = arith.constant 0 : i32
    %c0_i32_0 = arith.constant 0 : i32
    %c0_i32_1 = arith.constant 0 : i32
    return %c0_i32, %c0_i32_0 : i32, i32
  }
  func.func @transform_14(%arg0: i32, %arg1: memref<8x8xi32, #tpu.memory_space<smem>>) -> (i32, i32) {
    %c0_i32 = arith.constant 0 : i32
    %c0_i32_0 = arith.constant 0 : i32
    %c0_i32_1 = arith.constant 0 : i32
    return %c0_i32, %c0_i32_0 : i32, i32
  }
  func.func @transform_15(%arg0: i32, %arg1: memref<8x8xi32, #tpu.memory_space<smem>>) -> (i32, i32) {
    %c0_i32 = arith.constant 0 : i32
    %c0_i32_0 = arith.constant 0 : i32
    %c0_i32_1 = arith.constant 0 : i32
    return %c0_i32, %c0_i32_0 : i32, i32
  }
  func.func @transform_16(%arg0: i32, %arg1: memref<8x8xi32, #tpu.memory_space<smem>>) -> (i32, i32) {
    %c0_i32 = arith.constant 0 : i32
    %c0_i32_0 = arith.constant 0 : i32
    %c0_i32_1 = arith.constant 0 : i32
    return %c0_i32, %c0_i32_0 : i32, i32
  }
  func.func @transform_17(%arg0: i32, %arg1: memref<8x8xi32, #tpu.memory_space<smem>>) -> (i32, i32) {
    %c0_i32 = arith.constant 0 : i32
    %c0_i32_0 = arith.constant 0 : i32
    %c0_i32_1 = arith.constant 0 : i32
    return %c0_i32, %c0_i32_0 : i32, i32
  }
  func.func @transform_18(%arg0: i32, %arg1: memref<8x8xi32, #tpu.memory_space<smem>>) -> (i32, i32, i32) {
    %c0_i32 = arith.constant 0 : i32
    %c0_i32_0 = arith.constant 0 : i32
    %c0_i32_1 = arith.constant 0 : i32
    return %arg0, %c0_i32, %c0_i32_0 : i32, i32, i32
  }
  func.func @transform_19(%arg0: i32, %arg1: memref<8x8xi32, #tpu.memory_space<smem>>) -> (i32, i32, i32) {
    %c0_i32 = arith.constant 0 : i32
    %c0_i32_0 = arith.constant 0 : i32
    %c0_i32_1 = arith.constant 0 : i32
    return %arg0, %c0_i32, %c0_i32_0 : i32, i32, i32
  }
}

</mosaic_0001>

<llo_original>
// kernel: complex_attention_forward.1
$region0: #{complex_attention_forward.1}
  #allocation0 [shape = 'u32[]', space=smem, size = 0x4, offset = 0x4, fixed_abs, tag = 'smem constant byte address 0x4 - core index']
  #allocation1 [shape = 'u32[144,128]{1,0:T(1,128)}', space=vmem, size = 0x12000, scoped, tag = 'internal scratch']
  #allocation2 [shape = 'f32[8,32]{1,0:T(8,128)}', space=vmem, size = 0x1000, scoped, tag = 'scratch operand']
  #allocation3 [shape = 's32[1]{0}', space=sflag, size = 0x4, scoped, tag = 'scoped memory for complex_attention_forward.1']
  #allocation4 [shape = 'u8[4096]{0}', space=smem, size = 0x1000, scoped, tag = 'prefetched SMEM operand 0']
  %s0 = inlined_call_operand.vmem [shape: s32[8,8], index: 0, kind: input, shape index: {}, may-alias: {0,1}]
  %s1 = inlined_call_operand.vmem [shape: s32[8,1,8], index: 1, kind: input, shape index: {}, may-alias: {0,1}]
  %s2 = inlined_call_operand.vmem [shape: f32[32,32], index: 2, kind: input, shape index: {}]
  %s3 = inlined_call_operand.vmem [shape: f32[32,64], index: 3, kind: input, shape index: {}]
  %s4 = inlined_call_operand.vmem [shape: f32[1,64], index: 4, kind: input, shape index: {}]
  %s5 = inlined_call_operand.vmem [shape: f32[64,32], index: 5, kind: input, shape index: {}]
  %s6 = inlined_call_operand.vmem [shape: f32[1,32], index: 6, kind: input, shape index: {}]
  %s7 = inlined_call_operand.vmem [shape: f32[32,64], index: 7, kind: input, shape index: {}]
  %s8 = inlined_call_operand.vmem [shape: f32[1,64], index: 8, kind: input, shape index: {}]
  %s9 = inlined_call_operand.vmem [shape: f32[64,32], index: 9, kind: input, shape index: {}]
  %s10 = inlined_call_operand.vmem [shape: f32[1,32], index: 10, kind: input, shape index: {}]
  %s11 = inlined_call_operand.vmem [shape: f32[32,64], index: 11, kind: input, shape index: {}]
  %s12 = inlined_call_operand.vmem [shape: f32[1,64], index: 12, kind: input, shape index: {}]
  %s13 = inlined_call_operand.vmem [shape: f32[64,32], index: 13, kind: input, shape index: {}]
  %s14 = inlined_call_operand.vmem [shape: f32[1,32], index: 14, kind: input, shape index: {}]
  %s15 = inlined_call_operand.vmem [shape: f32[32,16], index: 15, kind: input, shape index: {}]
  %s16 = inlined_call_operand.vmem [shape: f32[1,16], index: 16, kind: input, shape index: {}]
  %s17 = inlined_call_operand.vmem [shape: f32[16,128], index: 17, kind: input, shape index: {}]
  %s18 = inlined_call_operand.vmem [shape: f32[1,128], index: 18, kind: input, shape index: {}]
  %s19 = inlined_call_operand.vmem [shape: f32[8,1,128], index: 19, kind: output, shape index: {0}]
  %s20 = inlined_call_operand.hbm [shape: f32[8,1,8], index: 20, kind: output, shape index: {1}]
  %21 = xla_tuple %s19, %s20
  %s22 = sld [smem:[#allocation0]]
  $region120: #{complex_attention_forward.1} parent=0
    _
  %s24 = ssub.s32 1, %s22
  %s25 = scalar_select 0, %s24, %s22
  %s26 = sshll.u32 %s0, 4
  %s27 = int_to_ptr.vmem [resolvable:$true] %s26
  %29 = dma.vmem_to_smem %s27, 128, [#allocation4], [#allocation3]
  %30 = dma.done [#allocation3], 128
  %31 = sfence
  $region1: #{complex_attention_forward.1} parent=0
    #allocation5 [shape = 'u8[1024]{0}', space=vmem, size = 0x400, scoped, tag = 'output window, operand 1']
    #allocation6 [shape = 's32[2]{0}', space=sflag, size = 0x8, scoped, tag = 'scoped memory for complex_attention_forward.1']
    %32 = vsyncpa [#allocation6], 0
    %s33 = scalar_lea.sflag [#allocation6], 1
    %34 = vsyncpa %s33, 0
    loop: start=0, step=1, limit=10
    $region2: #{complex_attention_forward.1} parent=1 // loop_pre_header
      _
    $region3: #{complex_attention_forward.1} parent=1 // loop_header
      %s36 = sphi 0, %s40
      %p37 = scmp.ge.s32.totalorder %s36, 10
      %s46 = sphi 0, %s48
      %s49 = sphi 0, %s46
      %s50 = sphi 0, %s49
      %s66 = sphi 0, %s50
      %s70 = sphi 0, %s70
      %s72 = sphi 0, %s70
      %s73 = sphi 0, %s72
      %s87 = sphi 0, %s73
      %s91 = sphi 0, %s91
      %s93 = sphi 0, %s91
      %s94 = sphi 0, %s93
      %s108 = sphi 0, %s94
      %s112 = sphi 0, %s112
      %s114 = sphi 0, %s112
      %s115 = sphi 0, %s114
      %s129 = sphi 0, %s115
      %s133 = sphi 0, %s133
      %s135 = sphi 0, %s133
      %s136 = sphi 0, %s135
      %s150 = sphi 0, %s136
      %s154 = sphi 0, %s154
      %s156 = sphi 0, %s154
      %s157 = sphi 0, %s156
      %s171 = sphi 0, %s157
      %s175 = sphi 0, %s175
      %s177 = sphi 0, %s175
      %s178 = sphi 0, %s177
      %s192 = sphi 0, %s178
      %s196 = sphi 0, %s196
      %s198 = sphi 0, %s196
      %s199 = sphi 0, %s198
      %s213 = sphi 0, %s199
      %s217 = sphi 0, %s217
      %s219 = sphi 0, %s217
      %s220 = sphi 0, %s219
      %s234 = sphi 0, %s220
      %s238 = sphi 0, %s238
      %s240 = sphi 0, %s238
      %s241 = sphi 0, %s240
      %s255 = sphi 0, %s241
      %s259 = sphi 0, %s259
      %s261 = sphi 0, %s259
      %s262 = sphi 0, %s261
      %s276 = sphi 0, %s262
      %s280 = sphi 0, %s280
      %s282 = sphi 0, %s280
      %s283 = sphi 0, %s282
      %s297 = sphi 0, %s283
      %s301 = sphi 0, %s301
      %s303 = sphi 0, %s301
      %s304 = sphi 0, %s303
      %s318 = sphi 0, %s304
      %s322 = sphi 0, %s322
      %s324 = sphi 0, %s322
      %s325 = sphi 0, %s324
      %s339 = sphi 0, %s325
      %s343 = sphi 0, %s343
      %s345 = sphi 0, %s343
      %s346 = sphi 0, %s345
      %s360 = sphi 0, %s346
      %s364 = sphi 0, %s364
      %s366 = sphi 0, %s364
      %s367 = sphi 0, %s366
      %s381 = sphi 0, %s367
      %s385 = sphi 0, %s385
      %s387 = sphi 0, %s385
      %s388 = sphi 0, %s387
      %s402 = sphi 0, %s388
      %s406 = sphi 0, %s406
      %s408 = sphi 0, %s406
      %s409 = sphi 0, %s408
      %s423 = sphi 0, %s409
      %s429 = sphi 0, %s431
      %s432 = sphi 0, %s429
      %s433 = sphi 0, %s432
      %s449 = sphi 0, %s433
      %s455 = sphi 0, %s457
      %s458 = sphi 0, %s455
      %s459 = sphi 0, %s458
      %s475 = sphi 0, %s459
    $region4: #{complex_attention_forward.1} parent=1 // loop_header_branch
      %39 = sbr.rel (%p37) target = $region8
    $region5: #{complex_attention_forward.1} parent=1 // loop_body
      %s41 = ssub.s32 %s36, 1
      %s42 = ssub.s32 %s36, 2
      %s43 = sadd.s32 %s36, 1
      %s44 = ssub.s32 %s36, %s43
      %p45 = scmp.eq.s32.totalorder %s44, 0
      %s47 = sadd.s32 %s46, 1
      %s48 = scalar_select %p45, %s46, %s47
      %p51 = pneg %p45
      %p52 = scmp.eq.s32.totalorder %s36, 7
      %p53 = por %p51, %p52
      %p54 = scmp.ne.s32.totalorder %s46, %s49
      %p55 = scmp.eq.s32.totalorder %s36, 0
      %p56 = por %p54, %p55
      %p57 = scmp.ne.s32.totalorder %s46, %s49
      %p58 = scmp.eq.s32.totalorder %s41, 7
      %p59 = por %p57, %p58
      %p60 = scmp.ne.s32.totalorder %s49, %s50
      %p61 = scmp.eq.s32.totalorder %s41, 0
      %p62 = por %p60, %p61
      %p63 = scmp.ne.s32.totalorder %s49, %s50
      %p64 = scmp.eq.s32.totalorder %s42, 7
      %p65 = por %p63, %p64
      %p67 = scmp.ne.s32.totalorder %s50, %s66
      %p68 = scmp.eq.s32.totalorder %s42, 0
      %p69 = por %p67, %p68
      %s71 = sadd.s32 %s70, 1
      %p74 = scmp.eq.s32.totalorder %s36, 7
      %p75 = scmp.ne.s32.totalorder %s70, %s72
      %p76 = scmp.eq.s32.totalorder %s36, 0
      %p77 = por %p75, %p76
      %p78 = scmp.ne.s32.totalorder %s70, %s72
      %p79 = scmp.eq.s32.totalorder %s41, 7
      %p80 = por %p78, %p79
      %p81 = scmp.ne.s32.totalorder %s72, %s73
      %p82 = scmp.eq.s32.totalorder %s41, 0
      %p83 = por %p81, %p82
      %p84 = scmp.ne.s32.totalorder %s72, %s73
      %p85 = scmp.eq.s32.totalorder %s42, 7
      %p86 = por %p84, %p85
      %p88 = scmp.ne.s32.totalorder %s73, %s87
      %p89 = scmp.eq.s32.totalorder %s42, 0
      %p90 = por %p88, %p89
      %s92 = sadd.s32 %s91, 1
      %p95 = scmp.eq.s32.totalorder %s36, 7
      %p96 = scmp.ne.s32.totalorder %s91, %s93
      %p97 = scmp.eq.s32.totalorder %s36, 0
      %p98 = por %p96, %p97
      %p99 = scmp.ne.s32.totalorder %s91, %s93
      %p100 = scmp.eq.s32.totalorder %s41, 7
      %p101 = por %p99, %p100
      %p102 = scmp.ne.s32.totalorder %s93, %s94
      %p103 = scmp.eq.s32.totalorder %s41, 0
      %p104 = por %p102, %p103
      %p105 = scmp.ne.s32.totalorder %s93, %s94
      %p106 = scmp.eq.s32.totalorder %s42, 7
      %p107 = por %p105, %p106
      %p109 = scmp.ne.s32.totalorder %s94, %s108
      %p110 = scmp.eq.s32.totalorder %s42, 0
      %p111 = por %p109, %p110
      %s113 = sadd.s32 %s112, 1
      %p116 = scmp.eq.s32.totalorder %s36, 7
      %p117 = scmp.ne.s32.totalorder %s112, %s114
      %p118 = scmp.eq.s32.totalorder %s36, 0
      %p119 = por %p117, %p118
      %p120 = scmp.ne.s32.totalorder %s112, %s114
      %p121 = scmp.eq.s32.totalorder %s41, 7
      %p122 = por %p120, %p121
      %p123 = scmp.ne.s32.totalorder %s114, %s115
      %p124 = scmp.eq.s32.totalorder %s41, 0
      %p125 = por %p123, %p124
      %p126 = scmp.ne.s32.totalorder %s114, %s115
      %p127 = scmp.eq.s32.totalorder %s42, 7
      %p128 = por %p126, %p127
      %p130 = scmp.ne.s32.totalorder %s115, %s129
      %p131 = scmp.eq.s32.totalorder %s42, 0
      %p132 = por %p130, %p131
      %s134 = sadd.s32 %s133, 1
      %p137 = scmp.eq.s32.totalorder %s36, 7
      %p138 = scmp.ne.s32.totalorder %s133, %s135
      %p139 = scmp.eq.s32.totalorder %s36, 0
      %p140 = por %p138, %p139
      %p141 = scmp.ne.s32.totalorder %s133, %s135
      %p142 = scmp.eq.s32.totalorder %s41, 7
      %p143 = por %p141, %p142
      %p144 = scmp.ne.s32.totalorder %s135, %s136
      %p145 = scmp.eq.s32.totalorder %s41, 0
      %p146 = por %p144, %p145
      %p147 = scmp.ne.s32.totalorder %s135, %s136
      %p148 = scmp.eq.s32.totalorder %s42, 7
      %p149 = por %p147, %p148
      %p151 = scmp.ne.s32.totalorder %s136, %s150
      %p152 = scmp.eq.s32.totalorder %s42, 0
      %p153 = por %p151, %p152
      %s155 = sadd.s32 %s154, 1
      %p158 = scmp.eq.s32.totalorder %s36, 7
      %p159 = scmp.ne.s32.totalorder %s154, %s156
      %p160 = scmp.eq.s32.totalorder %s36, 0
      %p161 = por %p159, %p160
      %p162 = scmp.ne.s32.totalorder %s154, %s156
      %p163 = scmp.eq.s32.totalorder %s41, 7
      %p164 = por %p162, %p163
      %p165 = scmp.ne.s32.totalorder %s156, %s157
      %p166 = scmp.eq.s32.totalorder %s41, 0
      %p167 = por %p165, %p166
      %p168 = scmp.ne.s32.totalorder %s156, %s157
      %p169 = scmp.eq.s32.totalorder %s42, 7
      %p170 = por %p168, %p169
      %p172 = scmp.ne.s32.totalorder %s157, %s171
      %p173 = scmp.eq.s32.totalorder %s42, 0
      %p174 = por %p172, %p173
      %s176 = sadd.s32 %s175, 1
      %p179 = scmp.eq.s32.totalorder %s36, 7
      %p180 = scmp.ne.s32.totalorder %s175, %s177
      %p181 = scmp.eq.s32.totalorder %s36, 0
      %p182 = por %p180, %p181
      %p183 = scmp.ne.s32.totalorder %s175, %s177
      %p184 = scmp.eq.s32.totalorder %s41, 7
      %p185 = por %p183, %p184
      %p186 = scmp.ne.s32.totalorder %s177, %s178
      %p187 = scmp.eq.s32.totalorder %s41, 0
      %p188 = por %p186, %p187
      %p189 = scmp.ne.s32.totalorder %s177, %s178
      %p190 = scmp.eq.s32.totalorder %s42, 7
      %p191 = por %p189, %p190
      %p193 = scmp.ne.s32.totalorder %s178, %s192
      %p194 = scmp.eq.s32.totalorder %s42, 0
      %p195 = por %p193, %p194
      %s197 = sadd.s32 %s196, 1
      %p200 = scmp.eq.s32.totalorder %s36, 7
      %p201 = scmp.ne.s32.totalorder %s196, %s198
      %p202 = scmp.eq.s32.totalorder %s36, 0
      %p203 = por %p201, %p202
      %p204 = scmp.ne.s32.totalorder %s196, %s198
      %p205 = scmp.eq.s32.totalorder %s41, 7
      %p206 = por %p204, %p205
      %p207 = scmp.ne.s32.totalorder %s198, %s199
      %p208 = scmp.eq.s32.totalorder %s41, 0
      %p209 = por %p207, %p208
      %p210 = scmp.ne.s32.totalorder %s198, %s199
      %p211 = scmp.eq.s32.totalorder %s42, 7
      %p212 = por %p210, %p211
      %p214 = scmp.ne.s32.totalorder %s199, %s213
      %p215 = scmp.eq.s32.totalorder %s42, 0
      %p216 = por %p214, %p215
      %s218 = sadd.s32 %s217, 1
      %p221 = scmp.eq.s32.totalorder %s36, 7
      %p222 = scmp.ne.s32.totalorder %s217, %s219
      %p223 = scmp.eq.s32.totalorder %s36, 0
      %p224 = por %p222, %p223
      %p225 = scmp.ne.s32.totalorder %s217, %s219
      %p226 = scmp.eq.s32.totalorder %s41, 7
      %p227 = por %p225, %p226
      %p228 = scmp.ne.s32.totalorder %s219, %s220
      %p229 = scmp.eq.s32.totalorder %s41, 0
      %p230 = por %p228, %p229
      %p231 = scmp.ne.s32.totalorder %s219, %s220
      %p232 = scmp.eq.s32.totalorder %s42, 7
      %p233 = por %p231, %p232
      %p235 = scmp.ne.s32.totalorder %s220, %s234
      %p236 = scmp.eq.s32.totalorder %s42, 0
      %p237 = por %p235, %p236
      %s239 = sadd.s32 %s238, 1
      %p242 = scmp.eq.s32.totalorder %s36, 7
      %p243 = scmp.ne.s32.totalorder %s238, %s240
      %p244 = scmp.eq.s32.totalorder %s36, 0
      %p245 = por %p243, %p244
      %p246 = scmp.ne.s32.totalorder %s238, %s240
      %p247 = scmp.eq.s32.totalorder %s41, 7
      %p248 = por %p246, %p247
      %p249 = scmp.ne.s32.totalorder %s240, %s241
      %p250 = scmp.eq.s32.totalorder %s41, 0
      %p251 = por %p249, %p250
      %p252 = scmp.ne.s32.totalorder %s240, %s241
      %p253 = scmp.eq.s32.totalorder %s42, 7
      %p254 = por %p252, %p253
      %p256 = scmp.ne.s32.totalorder %s241, %s255
      %p257 = scmp.eq.s32.totalorder %s42, 0
      %p258 = por %p256, %p257
      %s260 = sadd.s32 %s259, 1
      %p263 = scmp.eq.s32.totalorder %s36, 7
      %p264 = scmp.ne.s32.totalorder %s259, %s261
      %p265 = scmp.eq.s32.totalorder %s36, 0
      %p266 = por %p264, %p265
      %p267 = scmp.ne.s32.totalorder %s259, %s261
      %p268 = scmp.eq.s32.totalorder %s41, 7
      %p269 = por %p267, %p268
      %p270 = scmp.ne.s32.totalorder %s261, %s262
      %p271 = scmp.eq.s32.totalorder %s41, 0
      %p272 = por %p270, %p271
      %p273 = scmp.ne.s32.totalorder %s261, %s262
      %p274 = scmp.eq.s32.totalorder %s42, 7
      %p275 = por %p273, %p274
      %p277 = scmp.ne.s32.totalorder %s262, %s276
      %p278 = scmp.eq.s32.totalorder %s42, 0
      %p279 = por %p277, %p278
      %s281 = sadd.s32 %s280, 1
      %p284 = scmp.eq.s32.totalorder %s36, 7
      %p285 = scmp.ne.s32.totalorder %s280, %s282
      %p286 = scmp.eq.s32.totalorder %s36, 0
      %p287 = por %p285, %p286
      %p288 = scmp.ne.s32.totalorder %s280, %s282
      %p289 = scmp.eq.s32.totalorder %s41, 7
      %p290 = por %p288, %p289
      %p291 = scmp.ne.s32.totalorder %s282, %s283
      %p292 = scmp.eq.s32.totalorder %s41, 0
      %p293 = por %p291, %p292
      %p294 = scmp.ne.s32.totalorder %s282, %s283
      %p295 = scmp.eq.s32.totalorder %s42, 7
      %p296 = por %p294, %p295
      %p298 = scmp.ne.s32.totalorder %s283, %s297
      %p299 = scmp.eq.s32.totalorder %s42, 0
      %p300 = por %p298, %p299
      %s302 = sadd.s32 %s301, 1
      %p305 = scmp.eq.s32.totalorder %s36, 7
      %p306 = scmp.ne.s32.totalorder %s301, %s303
      %p307 = scmp.eq.s32.totalorder %s36, 0
      %p308 = por %p306, %p307
      %p309 = scmp.ne.s32.totalorder %s301, %s303
      %p310 = scmp.eq.s32.totalorder %s41, 7
      %p311 = por %p309, %p310
      %p312 = scmp.ne.s32.totalorder %s303, %s304
      %p313 = scmp.eq.s32.totalorder %s41, 0
      %p314 = por %p312, %p313
      %p315 = scmp.ne.s32.totalorder %s303, %s304
      %p316 = scmp.eq.s32.totalorder %s42, 7
      %p317 = por %p315, %p316
      %p319 = scmp.ne.s32.totalorder %s304, %s318
      %p320 = scmp.eq.s32.totalorder %s42, 0
      %p321 = por %p319, %p320
      %s323 = sadd.s32 %s322, 1
      %p326 = scmp.eq.s32.totalorder %s36, 7
      %p327 = scmp.ne.s32.totalorder %s322, %s324
      %p328 = scmp.eq.s32.totalorder %s36, 0
      %p329 = por %p327, %p328
      %p330 = scmp.ne.s32.totalorder %s322, %s324
      %p331 = scmp.eq.s32.totalorder %s41, 7
      %p332 = por %p330, %p331
      %p333 = scmp.ne.s32.totalorder %s324, %s325
      %p334 = scmp.eq.s32.totalorder %s41, 0
      %p335 = por %p333, %p334
      %p336 = scmp.ne.s32.totalorder %s324, %s325
      %p337 = scmp.eq.s32.totalorder %s42, 7
      %p338 = por %p336, %p337
      %p340 = scmp.ne.s32.totalorder %s325, %s339
      %p341 = scmp.eq.s32.totalorder %s42, 0
      %p342 = por %p340, %p341
      %s344 = sadd.s32 %s343, 1
      %p347 = scmp.eq.s32.totalorder %s36, 7
      %p348 = scmp.ne.s32.totalorder %s343, %s345
      %p349 = scmp.eq.s32.totalorder %s36, 0
      %p350 = por %p348, %p349
      %p351 = scmp.ne.s32.totalorder %s343, %s345
      %p352 = scmp.eq.s32.totalorder %s41, 7
      %p353 = por %p351, %p352
      %p354 = scmp.ne.s32.totalorder %s345, %s346
      %p355 = scmp.eq.s32.totalorder %s41, 0
      %p356 = por %p354, %p355
      %p357 = scmp.ne.s32.totalorder %s345, %s346
      %p358 = scmp.eq.s32.totalorder %s42, 7
      %p359 = por %p357, %p358
      %p361 = scmp.ne.s32.totalorder %s346, %s360
      %p362 = scmp.eq.s32.totalorder %s42, 0
      %p363 = por %p361, %p362
      %s365 = sadd.s32 %s364, 1
      %p368 = scmp.eq.s32.totalorder %s36, 7
      %p369 = scmp.ne.s32.totalorder %s364, %s366
      %p370 = scmp.eq.s32.totalorder %s36, 0
      %p371 = por %p369, %p370
      %p372 = scmp.ne.s32.totalorder %s364, %s366
      %p373 = scmp.eq.s32.totalorder %s41, 7
      %p374 = por %p372, %p373
      %p375 = scmp.ne.s32.totalorder %s366, %s367
      %p376 = scmp.eq.s32.totalorder %s41, 0
      %p377 = por %p375, %p376
      %p378 = scmp.ne.s32.totalorder %s366, %s367
      %p379 = scmp.eq.s32.totalorder %s42, 7
      %p380 = por %p378, %p379
      %p382 = scmp.ne.s32.totalorder %s367, %s381
      %p383 = scmp.eq.s32.totalorder %s42, 0
      %p384 = por %p382, %p383
      %s386 = sadd.s32 %s385, 1
      %p389 = scmp.eq.s32.totalorder %s36, 7
      %p390 = scmp.ne.s32.totalorder %s385, %s387
      %p391 = scmp.eq.s32.totalorder %s36, 0
      %p392 = por %p390, %p391
      %p393 = scmp.ne.s32.totalorder %s385, %s387
      %p394 = scmp.eq.s32.totalorder %s41, 7
      %p395 = por %p393, %p394
      %p396 = scmp.ne.s32.totalorder %s387, %s388
      %p397 = scmp.eq.s32.totalorder %s41, 0
      %p398 = por %p396, %p397
      %p399 = scmp.ne.s32.totalorder %s387, %s388
      %p400 = scmp.eq.s32.totalorder %s42, 7
      %p401 = por %p399, %p400
      %p403 = scmp.ne.s32.totalorder %s388, %s402
      %p404 = scmp.eq.s32.totalorder %s42, 0
      %p405 = por %p403, %p404
      %s407 = sadd.s32 %s406, 1
      %p410 = scmp.eq.s32.totalorder %s36, 7
      %p411 = scmp.ne.s32.totalorder %s406, %s408
      %p412 = scmp.eq.s32.totalorder %s36, 0
      %p413 = por %p411, %p412
      %p414 = scmp.ne.s32.totalorder %s406, %s408
      %p415 = scmp.eq.s32.totalorder %s41, 7
      %p416 = por %p414, %p415
      %p417 = scmp.ne.s32.totalorder %s408, %s409
      %p418 = scmp.eq.s32.totalorder %s41, 0
      %p419 = por %p417, %p418
      %p420 = scmp.ne.s32.totalorder %s408, %s409
      %p421 = scmp.eq.s32.totalorder %s42, 7
      %p422 = por %p420, %p421
      %p424 = scmp.ne.s32.totalorder %s409, %s423
      %p425 = scmp.eq.s32.totalorder %s42, 0
      %p426 = por %p424, %p425
      %s427 = ssub.s32 %s36, %s43
      %p428 = scmp.eq.s32.totalorder %s427, 0
      %s430 = sadd.s32 %s429, 1
      %s431 = scalar_select %p428, %s429, %s430
      %p434 = pneg %p428
      %p435 = scmp.eq.s32.totalorder %s36, 7
      %p436 = por %p434, %p435
      %p437 = scmp.ne.s32.totalorder %s429, %s432
      %p438 = scmp.eq.s32.totalorder %s36, 0
      %p439 = por %p437, %p438
      %p440 = scmp.ne.s32.totalorder %s429, %s432
      %p441 = scmp.eq.s32.totalorder %s41, 7
      %p442 = por %p440, %p441
      %p443 = scmp.ne.s32.totalorder %s432, %s433
      %p444 = scmp.eq.s32.totalorder %s41, 0
      %p445 = por %p443, %p444
      %p446 = scmp.ne.s32.totalorder %s432, %s433
      %p447 = scmp.eq.s32.totalorder %s42, 7
      %p448 = por %p446, %p447
      %p450 = scmp.ne.s32.totalorder %s433, %s449
      %p451 = scmp.eq.s32.totalorder %s42, 0
      %p452 = por %p450, %p451
      %s453 = ssub.s32 %s36, %s43
      %p454 = scmp.eq.s32.totalorder %s453, 0
      %s456 = sadd.s32 %s455, 1
      %s457 = scalar_select %p454, %s455, %s456
      %p460 = pneg %p454
      %p461 = scmp.eq.s32.totalorder %s36, 7
      %p462 = por %p460, %p461
      %p463 = scmp.ne.s32.totalorder %s455, %s458
      %p464 = scmp.eq.s32.totalorder %s36, 0
      %p465 = por %p463, %p464
      %p466 = scmp.ne.s32.totalorder %s455, %s458
      %p467 = scmp.eq.s32.totalorder %s41, 7
      %p468 = por %p466, %p467
      %p469 = scmp.ne.s32.totalorder %s458, %s459
      %p470 = scmp.eq.s32.totalorder %s41, 0
      %p471 = por %p469, %p470
      %p472 = scmp.ne.s32.totalorder %s458, %s459
      %p473 = scmp.eq.s32.totalorder %s42, 7
      %p474 = por %p472, %p473
      %p476 = scmp.ne.s32.totalorder %s459, %s475
      %p477 = scmp.eq.s32.totalorder %s42, 0
      %p478 = por %p476, %p477
      %p479 = scmp.le.s32.totalorder 1, %s36
      %p480 = scmp.lt.s32.totalorder %s36, 9
      %p481 = pnand %p479, %p480
      %p482 = pneg %p481
      // Predicated region
      $region9: #{complex_attention_forward.1} parent=5 // pred_check
        _
      $region10: #{complex_attention_forward.1} parent=5 // pred_check_branch
        %484 = sbr.rel (%p481) target = $region12
      $region11: #{complex_attention_forward.1} parent=5 // pred_region
        %s485 = ssub.s32 %s36, 1
        // Predicated region
        $region13: #{complex_attention_forward.1} parent=11 // pred_check
          %p486 = pneg %p83
        $region14: #{complex_attention_forward.1} parent=11 // pred_check_branch
          %488 = sbr.rel (%p486) target = $region16
        $region15: #{complex_attention_forward.1} parent=11 // pred_region
          _
        $region16: #{complex_attention_forward.1} parent=11 // pred_fallthru
          _
        // Predicated region
        $region17: #{complex_attention_forward.1} parent=11 // pred_check
          %p489 = pneg %p104
        $region18: #{complex_attention_forward.1} parent=11 // pred_check_branch
          %491 = sbr.rel (%p489) target = $region20
        $region19: #{complex_attention_forward.1} parent=11 // pred_region
          _
        $region20: #{complex_attention_forward.1} parent=11 // pred_fallthru
          _
        // Predicated region
        $region21: #{complex_attention_forward.1} parent=11 // pred_check
          %p492 = pneg %p125
        $region22: #{complex_attention_forward.1} parent=11 // pred_check_branch
          %494 = sbr.rel (%p492) target = $region24
        $region23: #{complex_attention_forward.1} parent=11 // pred_region
          _
        $region24: #{complex_attention_forward.1} parent=11 // pred_fallthru
          _
        // Predicated region
        $region25: #{complex_attention_forward.1} parent=11 // pred_check
          %p495 = pneg %p146
        $region26: #{complex_attention_forward.1} parent=11 // pred_check_branch
          %497 = sbr.rel (%p495) target = $region28
        $region27: #{complex_attention_forward.1} parent=11 // pred_region
          _
        $region28: #{complex_attention_forward.1} parent=11 // pred_fallthru
          _
        // Predicated region
        $region29: #{complex_attention_forward.1} parent=11 // pred_check
          %p498 = pneg %p167
        $region30: #{complex_attention_forward.1} parent=11 // pred_check_branch
          %500 = sbr.rel (%p498) target = $region32
        $region31: #{complex_attention_forward.1} parent=11 // pred_region
          _
        $region32: #{complex_attention_forward.1} parent=11 // pred_fallthru
          _
        // Predicated region
        $region33: #{complex_attention_forward.1} parent=11 // pred_check
          %p501 = pneg %p188
        $region34: #{complex_attention_forward.1} parent=11 // pred_check_branch
          %503 = sbr.rel (%p501) target = $region36
        $region35: #{complex_attention_forward.1} parent=11 // pred_region
          _
        $region36: #{complex_attention_forward.1} parent=11 // pred_fallthru
          _
        // Predicated region
        $region37: #{complex_attention_forward.1} parent=11 // pred_check
          %p504 = pneg %p209
        $region38: #{complex_attention_forward.1} parent=11 // pred_check_branch
          %506 = sbr.rel (%p504) target = $region40
        $region39: #{complex_attention_forward.1} parent=11 // pred_region
          _
        $region40: #{complex_attention_forward.1} parent=11 // pred_fallthru
          _
        // Predicated region
        $region41: #{complex_attention_forward.1} parent=11 // pred_check
          %p507 = pneg %p230
        $region42: #{complex_attention_forward.1} parent=11 // pred_check_branch
          %509 = sbr.rel (%p507) target = $region44
        $region43: #{complex_attention_forward.1} parent=11 // pred_region
          _
        $region44: #{complex_attention_forward.1} parent=11 // pred_fallthru
          _
        // Predicated region
        $region45: #{complex_attention_forward.1} parent=11 // pred_check
          %p510 = pneg %p251
        $region46: #{complex_attention_forward.1} parent=11 // pred_check_branch
          %512 = sbr.rel (%p510) target = $region48
        $region47: #{complex_attention_forward.1} parent=11 // pred_region
          _
        $region48: #{complex_attention_forward.1} parent=11 // pred_fallthru
          _
        // Predicated region
        $region49: #{complex_attention_forward.1} parent=11 // pred_check
          %p513 = pneg %p272
        $region50: #{complex_attention_forward.1} parent=11 // pred_check_branch
          %515 = sbr.rel (%p513) target = $region52
        $region51: #{complex_attention_forward.1} parent=11 // pred_region
          _
        $region52: #{complex_attention_forward.1} parent=11 // pred_fallthru
          _
        // Predicated region
        $region53: #{complex_attention_forward.1} parent=11 // pred_check
          %p516 = pneg %p293
        $region54: #{complex_attention_forward.1} parent=11 // pred_check_branch
          %518 = sbr.rel (%p516) target = $region56
        $region55: #{complex_attention_forward.1} parent=11 // pred_region
          _
        $region56: #{complex_attention_forward.1} parent=11 // pred_fallthru
          _
        // Predicated region
        $region57: #{complex_attention_forward.1} parent=11 // pred_check
          %p519 = pneg %p314
        $region58: #{complex_attention_forward.1} parent=11 // pred_check_branch
          %521 = sbr.rel (%p519) target = $region60
        $region59: #{complex_attention_forward.1} parent=11 // pred_region
          _
        $region60: #{complex_attention_forward.1} parent=11 // pred_fallthru
          _
        // Predicated region
        $region61: #{complex_attention_forward.1} parent=11 // pred_check
          %p522 = pneg %p335
        $region62: #{complex_attention_forward.1} parent=11 // pred_check_branch
          %524 = sbr.rel (%p522) target = $region64
        $region63: #{complex_attention_forward.1} parent=11 // pred_region
          _
        $region64: #{complex_attention_forward.1} parent=11 // pred_fallthru
          _
        // Predicated region
        $region65: #{complex_attention_forward.1} parent=11 // pred_check
          %p525 = pneg %p356
        $region66: #{complex_attention_forward.1} parent=11 // pred_check_branch
          %527 = sbr.rel (%p525) target = $region68
        $region67: #{complex_attention_forward.1} parent=11 // pred_region
          _
        $region68: #{complex_attention_forward.1} parent=11 // pred_fallthru
          _
        // Predicated region
        $region69: #{complex_attention_forward.1} parent=11 // pred_check
          %p528 = pneg %p377
        $region70: #{complex_attention_forward.1} parent=11 // pred_check_branch
          %530 = sbr.rel (%p528) target = $region72
        $region71: #{complex_attention_forward.1} parent=11 // pred_region
          _
        $region72: #{complex_attention_forward.1} parent=11 // pred_fallthru
          _
        // Predicated region
        $region73: #{complex_attention_forward.1} parent=11 // pred_check
          %p531 = pneg %p398
        $region74: #{complex_attention_forward.1} parent=11 // pred_check_branch
          %533 = sbr.rel (%p531) target = $region76
        $region75: #{complex_attention_forward.1} parent=11 // pred_region
          _
        $region76: #{complex_attention_forward.1} parent=11 // pred_fallthru
          _
        // Predicated region
        $region77: #{complex_attention_forward.1} parent=11 // pred_check
          %p534 = pneg %p419
        $region78: #{complex_attention_forward.1} parent=11 // pred_check_branch
          %536 = sbr.rel (%p534) target = $region80
        $region79: #{complex_attention_forward.1} parent=11 // pred_region
          _
        $region80: #{complex_attention_forward.1} parent=11 // pred_fallthru
          _
      $region12: #{complex_attention_forward.1} parent=5 // pred_fallthru
        _
      %p537 = scmp.lt.s32.totalorder %s36, 8
      // Predicated region
      $region81: #{complex_attention_forward.1} parent=5 // pred_check
        %p538 = pneg %p537
      $region82: #{complex_attention_forward.1} parent=5 // pred_check_branch
        %540 = sbr.rel (%p538) target = $region84
      $region83: #{complex_attention_forward.1} parent=5 // pred_region
        // Predicated region
        $region85: #{complex_attention_forward.1} parent=83 // pred_check
          %p541 = pneg %p56
        $region86: #{complex_attention_forward.1} parent=83 // pred_check_branch
          %543 = sbr.rel (%p541) target = $region88
        $region87: #{complex_attention_forward.1} parent=83 // pred_region
          %p544 = scmp.lt.s32.totalorder %s36, 7
          %s545 = scalar_select %p544, %s36, 7
          %s546 = scalar_lea.vmem %s1, %s545
        $region88: #{complex_attention_forward.1} parent=83 // pred_fallthru
          _
      $region84: #{complex_attention_forward.1} parent=5 // pred_fallthru
        _
      %p547 = scmp.le.s32.totalorder 1, %s36
      %p548 = scmp.lt.s32.totalorder %s36, 9
      %p549 = pnand %p547, %p548
      %p550 = pneg %p549
      // Predicated region
      $region89: #{complex_attention_forward.1} parent=5 // pred_check
        _
      $region90: #{complex_attention_forward.1} parent=5 // pred_check_branch
        %552 = sbr.rel (%p549) target = $region92
      $region91: #{complex_attention_forward.1} parent=5 // pred_region
        %s553 = ssub.s32 %s36, 1
        %p554 = scmp.lt.s32.totalorder %s41, 7
        %s555 = scalar_select %p554, %s41, 7
        %s556 = scalar_lea.vmem %s1, %s555
        %p557 = pneg %p62
        %p558 = pneg %p59
        %p559 = pneg %p83
        %p560 = pneg %p80
        %p561 = pneg %p104
        %p562 = pneg %p101
        %p563 = pneg %p125
        %p564 = pneg %p122
        %p565 = pneg %p146
        %p566 = pneg %p143
        %p567 = pneg %p167
        %p568 = pneg %p164
        %p569 = pneg %p188
        %p570 = pneg %p185
        %p571 = pneg %p209
        %p572 = pneg %p206
        %p573 = pneg %p230
        %p574 = pneg %p227
        %p575 = pneg %p251
        %p576 = pneg %p248
        %p577 = pneg %p272
        %p578 = pneg %p269
        %p579 = pneg %p293
        %p580 = pneg %p290
        %p581 = pneg %p314
        %p582 = pneg %p311
        %p583 = pneg %p335
        %p584 = pneg %p332
        %p585 = pneg %p356
        %p586 = pneg %p353
        %p587 = pneg %p377
        %p588 = pneg %p374
        %p589 = pneg %p398
        %p590 = pneg %p395
        %p591 = pneg %p419
        %p592 = pneg %p416
        %p593 = pneg %p445
        %p594 = pneg %p442
        %p595 = scmp.lt.s32.totalorder %s41, 7
        %s596 = scalar_select %p595, %s41, 7
        %s597 = scalar_lea.vmem %s19, %s596
        %p598 = pneg %p471
        %p599 = pneg %p468
        %s600 = sand.u32 %s458, 1
        %s601 = scalar_lea.sflag [#allocation6], %s600
        %s602 = sand.u32 %s458, 1
        %s603 = scalar_lea.vmem [#allocation5], %s602
        %p604 = scmp.lt.s32.totalorder %s41, 7
        %s605 = scalar_select %p604, %s41, 7
        %s606 = scalar_lea.vmem %s1, %s605
        %p607 = scmp.lt.s32.totalorder %s41, 7
        %s608 = scalar_select %p607, %s41, 7
        %s609 = scalar_lea.vmem %s19, %s608
        loop: start=0, step=1, limit=8
        $region93: #{complex_attention_forward.1} parent=91 // loop_pre_header
          _
        $region94: #{complex_attention_forward.1} parent=91 // loop_header
          %s611 = sphi 0, %s615
          %p612 = scmp.ge.s32.totalorder %s611, 8
        $region95: #{complex_attention_forward.1} parent=91 // loop_header_branch
          %614 = sbr.rel (%p612) target = $region99
        $region96: #{complex_attention_forward.1} parent=91 // loop_body
          %s616 = sshra.s32 %s611, 7
          %s617 = sand.u32 %s611, 127
          %s618 = sadd.s32 %s616, %s41
          %s619 = smul.u32 %s618, 128
          %s620 = sshra.s32 %s611, 7
          %s621 = sand.u32 %s611, 127
          %s622 = sadd.s32 %s619, %s621
          %s623 = sld [smem:[#allocation4 + %s622]]
          %s624 = scalar_lea.vmem %s2, %s623
          %v625 = vld [vmem:[%s624] sm:$0x1]
          %s626 = scalar_lea.vmem [#allocation2], %s611
          %vm627 = vcmask 253952
          %628 = vst.msk [vmem:[%s626] sm:$0x1] %vm627, %v625
        $region97: #{complex_attention_forward.1} parent=91 // loop_footer
          %s615 = sadd.s32 1, %s611
        $region98: #{complex_attention_forward.1} parent=91 // loop_footer_branch
          %610 = sbr.rel target = $region94
        $region99: #{complex_attention_forward.1} parent=91 // loop_exit
          _
        %v629 = vld [vmem:[#allocation2] sm:$0xff]
        %v630 = vld [vmem:[%s3] sm:$0xff]
        %v631 = vld [vmem:[%s3 + $0x8] sm:$0xff]
        %v632 = vld [vmem:[%s3 + $0x10] sm:$0xff]
        %v633 = vld [vmem:[%s3 + $0x18] sm:$0xff]
        %v634 = vld [vmem:[%s4] sm:$0x1]
        %v636 = vlaneseq
        %v637 = vshrl.u32 %v636, 7
        %v638 = vsub.s32 0, %v637
        %v639 = vrot.slane %v634, %v638
        %vm641 = vcmask 261120
        %v643 = vsel %vm641, %v629, 0
        %645 = vmatprep.subr.mxu0 0.0
        %646 = vmatpush1.msra.mxu0 %v630
        %647 = vmatprep.subr.mxu0 0.0
        %648 = vmatpush1.msra.mxu0 %v631
        %649 = vmatprep.subr.mxu0 0.0
        %650 = vmatpush1.msra.mxu0 %v632
        %651 = vmatprep.subr.mxu0 0.0
        %652 = vmatpush1.msra.mxu0 %v633
        %653 = vmatprep.subr.mxu0 0.0
        %654 = vmatpush1.msra.mxu0 0.0
        %655 = vmatprep.subr.mxu0 0.0
        %656 = vmatpush1.msra.mxu0 0.0
        %657 = vmatprep.subr.mxu0 0.0
        %658 = vmatpush1.msra.mxu0 0.0
        %659 = vmatprep.subr.mxu0 0.0
        %660 = vmatpush1.msra.mxu0 0.0
        %661 = vmatprep.subr.mxu0 0.0
        %662 = vmatpush1.msra.mxu0 0.0
        %663 = vmatprep.subr.mxu0 0.0
        %664 = vmatpush1.msra.mxu0 0.0
        %665 = vmatprep.subr.mxu0 0.0
        %666 = vmatpush1.msra.mxu0 0.0
        %667 = vmatprep.subr.mxu0 0.0
        %668 = vmatpush1.msra.mxu0 0.0
        %669 = vmatprep.subr.mxu0 0.0
        %670 = vmatpush1.msra.mxu0 0.0
        %671 = vmatprep.subr.mxu0 0.0
        %672 = vmatpush1.msra.mxu0 0.0
        %673 = vmatprep.subr.mxu0 0.0
        %674 = vmatpush1.msra.mxu0 0.0
        %675 = vmatprep.subr.mxu0 0.0
        %676 = vmatpush1.msra.mxu0 0.0
        %677 = vmatprep.subr.mxu0 0.0
        %678 = vmatpush1.msra.mxu0 0.0
        %679 = vmatprep.subr.mxu0 0.0
        %680 = vmatpush1.msra.mxu0 0.0
        %681 = vmatprep.subr.mxu0 0.0
        %682 = vmatpush1.msra.mxu0 0.0
        %683 = vmatprep.subr.mxu0 0.0
        %684 = vmatpush1.msra.mxu0 0.0
        %685 = vmatprep.subr.mxu0 0.0
        %686 = vmatpush1.msra.mxu0 0.0
        %687 = vmatprep.subr.mxu0 0.0
        %688 = vmatpush1.msra.mxu0 0.0
        %689 = vmatprep.subr.mxu0 0.0
        %690 = vmatpush1.msra.mxu0 0.0
        %691 = vmatprep.subr.mxu0 0.0
        %692 = vmatpush1.msra.mxu0 0.0
        %693 = vmatprep.subr.mxu0 0.0
        %694 = vmatpush1.msra.mxu0 0.0
        %695 = vmatprep.subr.mxu0 0.0
        %696 = vmatpush1.msra.mxu0 0.0
        %697 = vmatprep.subr.mxu0 0.0
        %698 = vmatpush1.msra.mxu0 0.0
        %699 = vmatprep.subr.mxu0 0.0
        %700 = vmatpush1.msra.mxu0 0.0
        %701 = vmatprep.subr.mxu0 0.0
        %702 = vmatpush1.msra.mxu0 0.0
        %703 = vmatprep.subr.mxu0 0.0
        %704 = vmatpush1.msra.mxu0 0.0
        %705 = vmatprep.subr.mxu0 0.0
        %706 = vmatpush1.msra.mxu0 0.0
        %707 = vmatprep.subr.mxu0 0.0
        %708 = vmatpush1.msra.mxu0 0.0
        %709 = vmatprep.mubr.f32.mxu0 0.0
        %710 = vmatmul.mubr.f32.gmra.mrb[0].mxu0 %v643
        %v711 = vpop.f32.mrb[0].mxu0
        %v712 = vadd.f32 %v639, %v711
        %v713 = vpop.f32.mrb[0].mxu0
        %714 = vdwg.mxu0
        %v715 = vmax.f32 %v712, 0.0
        %v716 = vld [vmem:[%s5] sm:$0xff]
        %v717 = vld [vmem:[%s5 + $0x8] sm:$0xff]
        %v718 = vld [vmem:[%s5 + $0x10] sm:$0xff]
        %v719 = vld [vmem:[%s5 + $0x18] sm:$0xff]
        %v720 = vld [vmem:[%s5 + $0x20] sm:$0xff]
        %v721 = vld [vmem:[%s5 + $0x28] sm:$0xff]
        %v722 = vld [vmem:[%s5 + $0x30] sm:$0xff]
        %v723 = vld [vmem:[%s5 + $0x38] sm:$0xff]
        %v724 = vld [vmem:[%s6] sm:$0x1]
        %v726 = vlaneseq
        %v727 = vshrl.u32 %v726, 7
        %v728 = vsub.s32 0, %v727
        %v729 = vrot.slane %v724, %v728
        %vm731 = vcmask 523264
        %v733 = vsel %vm731, %v715, 0
        %735 = vmatprep.subr.mxu0 0.0
        %736 = vmatpush1.msra.mxu0 %v716
        %737 = vmatprep.subr.mxu0 0.0
        %738 = vmatpush1.msra.mxu0 %v717
        %739 = vmatprep.subr.mxu0 0.0
        %740 = vmatpush1.msra.mxu0 %v718
        %741 = vmatprep.subr.mxu0 0.0
        %742 = vmatpush1.msra.mxu0 %v719
        %743 = vmatprep.subr.mxu0 0.0
        %744 = vmatpush1.msra.mxu0 %v720
        %745 = vmatprep.subr.mxu0 0.0
        %746 = vmatpush1.msra.mxu0 %v721
        %747 = vmatprep.subr.mxu0 0.0
        %748 = vmatpush1.msra.mxu0 %v722
        %749 = vmatprep.subr.mxu0 0.0
        %750 = vmatpush1.msra.mxu0 %v723
        %751 = vmatprep.subr.mxu0 0.0
        %752 = vmatpush1.msra.mxu0 0.0
        %753 = vmatprep.subr.mxu0 0.0
        %754 = vmatpush1.msra.mxu0 0.0
        %755 = vmatprep.subr.mxu0 0.0
        %756 = vmatpush1.msra.mxu0 0.0
        %757 = vmatprep.subr.mxu0 0.0
        %758 = vmatpush1.msra.mxu0 0.0
        %759 = vmatprep.subr.mxu0 0.0
        %760 = vmatpush1.msra.mxu0 0.0
        %761 = vmatprep.subr.mxu0 0.0
        %762 = vmatpush1.msra.mxu0 0.0
        %763 = vmatprep.subr.mxu0 0.0
        %764 = vmatpush1.msra.mxu0 0.0
        %765 = vmatprep.subr.mxu0 0.0
        %766 = vmatpush1.msra.mxu0 0.0
        %767 = vmatprep.subr.mxu0 0.0
        %768 = vmatpush1.msra.mxu0 0.0
        %769 = vmatprep.subr.mxu0 0.0
        %770 = vmatpush1.msra.mxu0 0.0
        %771 = vmatprep.subr.mxu0 0.0
        %772 = vmatpush1.msra.mxu0 0.0
        %773 = vmatprep.subr.mxu0 0.0
        %774 = vmatpush1.msra.mxu0 0.0
        %775 = vmatprep.subr.mxu0 0.0
        %776 = vmatpush1.msra.mxu0 0.0
        %777 = vmatprep.subr.mxu0 0.0
        %778 = vmatpush1.msra.mxu0 0.0
        %779 = vmatprep.subr.mxu0 0.0
        %780 = vmatpush1.msra.mxu0 0.0
        %781 = vmatprep.subr.mxu0 0.0
        %782 = vmatpush1.msra.mxu0 0.0
        %783 = vmatprep.subr.mxu0 0.0
        %784 = vmatpush1.msra.mxu0 0.0
        %785 = vmatprep.subr.mxu0 0.0
        %786 = vmatpush1.msra.mxu0 0.0
        %787 = vmatprep.subr.mxu0 0.0
        %788 = vmatpush1.msra.mxu0 0.0
        %789 = vmatprep.subr.mxu0 0.0
        %790 = vmatpush1.msra.mxu0 0.0
        %791 = vmatprep.subr.mxu0 0.0
        %792 = vmatpush1.msra.mxu0 0.0
        %793 = vmatprep.subr.mxu0 0.0
        %794 = vmatpush1.msra.mxu0 0.0
        %795 = vmatprep.subr.mxu0 0.0
        %796 = vmatpush1.msra.mxu0 0.0
        %797 = vmatprep.subr.mxu0 0.0
        %798 = vmatpush1.msra.mxu0 0.0
        %799 = vmatprep.mubr.f32.mxu0 0.0
        %800 = vmatmul.mubr.f32.gmra.mrb[0].mxu0 %v733
        %v801 = vpop.f32.mrb[0].mxu0
        %v802 = vadd.f32 %v729, %v801
        %v803 = vpop.f32.mrb[0].mxu0
        %804 = vdwg.mxu0
        %v805 = vld [vmem:[%s7] sm:$0xff]
        %v806 = vld [vmem:[%s7 + $0x8] sm:$0xff]
        %v807 = vld [vmem:[%s7 + $0x10] sm:$0xff]
        %v808 = vld [vmem:[%s7 + $0x18] sm:$0xff]
        %v809 = vld [vmem:[%s8] sm:$0x1]
        %v811 = vlaneseq
        %v812 = vshrl.u32 %v811, 7
        %v813 = vsub.s32 0, %v812
        %v814 = vrot.slane %v809, %v813
        %816 = vmatprep.subr.mxu0 0.0
        %817 = vmatpush1.msra.mxu0 %v805
        %818 = vmatprep.subr.mxu0 0.0
        %819 = vmatpush1.msra.mxu0 %v806
        %820 = vmatprep.subr.mxu0 0.0
        %821 = vmatpush1.msra.mxu0 %v807
        %822 = vmatprep.subr.mxu0 0.0
        %823 = vmatpush1.msra.mxu0 %v808
        %824 = vmatprep.subr.mxu0 0.0
        %825 = vmatpush1.msra.mxu0 0.0
        %826 = vmatprep.subr.mxu0 0.0
        %827 = vmatpush1.msra.mxu0 0.0
        %828 = vmatprep.subr.mxu0 0.0
        %829 = vmatpush1.msra.mxu0 0.0
        %830 = vmatprep.subr.mxu0 0.0
        %831 = vmatpush1.msra.mxu0 0.0
        %832 = vmatprep.subr.mxu0 0.0
        %833 = vmatpush1.msra.mxu0 0.0
        %834 = vmatprep.subr.mxu0 0.0
        %835 = vmatpush1.msra.mxu0 0.0
        %836 = vmatprep.subr.mxu0 0.0
        %837 = vmatpush1.msra.mxu0 0.0
        %838 = vmatprep.subr.mxu0 0.0
        %839 = vmatpush1.msra.mxu0 0.0
        %840 = vmatprep.subr.mxu0 0.0
        %841 = vmatpush1.msra.mxu0 0.0
        %842 = vmatprep.subr.mxu0 0.0
        %843 = vmatpush1.msra.mxu0 0.0
        %844 = vmatprep.subr.mxu0 0.0
        %845 = vmatpush1.msra.mxu0 0.0
        %846 = vmatprep.subr.mxu0 0.0
        %847 = vmatpush1.msra.mxu0 0.0
        %848 = vmatprep.subr.mxu0 0.0
        %849 = vmatpush1.msra.mxu0 0.0
        %850 = vmatprep.subr.mxu0 0.0
        %851 = vmatpush1.msra.mxu0 0.0
        %852 = vmatprep.subr.mxu0 0.0
        %853 = vmatpush1.msra.mxu0 0.0
        %854 = vmatprep.subr.mxu0 0.0
        %855 = vmatpush1.msra.mxu0 0.0
        %856 = vmatprep.subr.mxu0 0.0
        %857 = vmatpush1.msra.mxu0 0.0
        %858 = vmatprep.subr.mxu0 0.0
        %859 = vmatpush1.msra.mxu0 0.0
        %860 = vmatprep.subr.mxu0 0.0
        %861 = vmatpush1.msra.mxu0 0.0
        %862 = vmatprep.subr.mxu0 0.0
        %863 = vmatpush1.msra.mxu0 0.0
        %864 = vmatprep.subr.mxu0 0.0
        %865 = vmatpush1.msra.mxu0 0.0
        %866 = vmatprep.subr.mxu0 0.0
        %867 = vmatpush1.msra.mxu0 0.0
        %868 = vmatprep.subr.mxu0 0.0
        %869 = vmatpush1.msra.mxu0 0.0
        %870 = vmatprep.subr.mxu0 0.0
        %871 = vmatpush1.msra.mxu0 0.0
        %872 = vmatprep.subr.mxu0 0.0
        %873 = vmatpush1.msra.mxu0 0.0
        %874 = vmatprep.subr.mxu0 0.0
        %875 = vmatpush1.msra.mxu0 0.0
        %876 = vmatprep.subr.mxu0 0.0
        %877 = vmatpush1.msra.mxu0 0.0
        %878 = vmatprep.subr.mxu0 0.0
        %879 = vmatpush1.msra.mxu0 0.0
        %880 = vmatprep.mubr.f32.mxu0 0.0
        %881 = vmatmul.mubr.f32.gmra.mrb[0].mxu0 %v643
        %v882 = vpop.f32.mrb[0].mxu0
        %v883 = vadd.f32 %v814, %v882
        %v884 = vpop.f32.mrb[0].mxu0
        %885 = vdwg.mxu0
        %v886 = vmax.f32 %v883, 0.0
        %v887 = vld [vmem:[%s9] sm:$0xff]
        %v888 = vld [vmem:[%s9 + $0x8] sm:$0xff]
        %v889 = vld [vmem:[%s9 + $0x10] sm:$0xff]
        %v890 = vld [vmem:[%s9 + $0x18] sm:$0xff]
        %v891 = vld [vmem:[%s9 + $0x20] sm:$0xff]
        %v892 = vld [vmem:[%s9 + $0x28] sm:$0xff]
        %v893 = vld [vmem:[%s9 + $0x30] sm:$0xff]
        %v894 = vld [vmem:[%s9 + $0x38] sm:$0xff]
        %v895 = vld [vmem:[%s10] sm:$0x1]
        %v897 = vlaneseq
        %v898 = vshrl.u32 %v897, 7
        %v899 = vsub.s32 0, %v898
        %v900 = vrot.slane %v895, %v899
        %v903 = vsel %vm731, %v886, 0
        %905 = vmatprep.subr.mxu0 0.0
        %906 = vmatpush1.msra.mxu0 %v887
        %907 = vmatprep.subr.mxu0 0.0
        %908 = vmatpush1.msra.mxu0 %v888
        %909 = vmatprep.subr.mxu0 0.0
        %910 = vmatpush1.msra.mxu0 %v889
        %911 = vmatprep.subr.mxu0 0.0
        %912 = vmatpush1.msra.mxu0 %v890
        %913 = vmatprep.subr.mxu0 0.0
        %914 = vmatpush1.msra.mxu0 %v891
        %915 = vmatprep.subr.mxu0 0.0
        %916 = vmatpush1.msra.mxu0 %v892
        %917 = vmatprep.subr.mxu0 0.0
        %918 = vmatpush1.msra.mxu0 %v893
        %919 = vmatprep.subr.mxu0 0.0
        %920 = vmatpush1.msra.mxu0 %v894
        %921 = vmatprep.subr.mxu0 0.0
        %922 = vmatpush1.msra.mxu0 0.0
        %923 = vmatprep.subr.mxu0 0.0
        %924 = vmatpush1.msra.mxu0 0.0
        %925 = vmatprep.subr.mxu0 0.0
        %926 = vmatpush1.msra.mxu0 0.0
        %927 = vmatprep.subr.mxu0 0.0
        %928 = vmatpush1.msra.mxu0 0.0
        %929 = vmatprep.subr.mxu0 0.0
        %930 = vmatpush1.msra.mxu0 0.0
        %931 = vmatprep.subr.mxu0 0.0
        %932 = vmatpush1.msra.mxu0 0.0
        %933 = vmatprep.subr.mxu0 0.0
        %934 = vmatpush1.msra.mxu0 0.0
        %935 = vmatprep.subr.mxu0 0.0
        %936 = vmatpush1.msra.mxu0 0.0
        %937 = vmatprep.subr.mxu0 0.0
        %938 = vmatpush1.msra.mxu0 0.0
        %939 = vmatprep.subr.mxu0 0.0
        %940 = vmatpush1.msra.mxu0 0.0
        %941 = vmatprep.subr.mxu0 0.0
        %942 = vmatpush1.msra.mxu0 0.0
        %943 = vmatprep.subr.mxu0 0.0
        %944 = vmatpush1.msra.mxu0 0.0
        %945 = vmatprep.subr.mxu0 0.0
        %946 = vmatpush1.msra.mxu0 0.0
        %947 = vmatprep.subr.mxu0 0.0
        %948 = vmatpush1.msra.mxu0 0.0
        %949 = vmatprep.subr.mxu0 0.0
        %950 = vmatpush1.msra.mxu0 0.0
        %951 = vmatprep.subr.mxu0 0.0
        %952 = vmatpush1.msra.mxu0 0.0
        %953 = vmatprep.subr.mxu0 0.0
        %954 = vmatpush1.msra.mxu0 0.0
        %955 = vmatprep.subr.mxu0 0.0
        %956 = vmatpush1.msra.mxu0 0.0
        %957 = vmatprep.subr.mxu0 0.0
        %958 = vmatpush1.msra.mxu0 0.0
        %959 = vmatprep.subr.mxu0 0.0
        %960 = vmatpush1.msra.mxu0 0.0
        %961 = vmatprep.subr.mxu0 0.0
        %962 = vmatpush1.msra.mxu0 0.0
        %963 = vmatprep.subr.mxu0 0.0
        %964 = vmatpush1.msra.mxu0 0.0
        %965 = vmatprep.subr.mxu0 0.0
        %966 = vmatpush1.msra.mxu0 0.0
        %967 = vmatprep.subr.mxu0 0.0
        %968 = vmatpush1.msra.mxu0 0.0
        %969 = vmatprep.mubr.f32.mxu0 0.0
        %970 = vmatmul.mubr.f32.gmra.mrb[0].mxu0 %v903
        %v971 = vpop.f32.mrb[0].mxu0
        %v972 = vadd.f32 %v900, %v971
        %v973 = vpop.f32.mrb[0].mxu0
        %974 = vdwg.mxu0
        %v975 = vsel %vm641, %v802, 0.0
        %v976 = vrot.slane %v975, 4
        %v977 = vadd.f32 %v975, %v976
        %v978 = vrot.slane %v977, 2
        %v979 = vadd.f32 %v977, %v978
        %v980 = vrot.slane %v979, 1
        %v981 = vadd.f32 %v979, %v980
        %v982 = vmul.f32 %v981, 0.125
        %v983 = vld [vmem:[%s11] sm:$0xff]
        %v984 = vld [vmem:[%s11 + $0x8] sm:$0xff]
        %v985 = vld [vmem:[%s11 + $0x10] sm:$0xff]
        %v986 = vld [vmem:[%s11 + $0x18] sm:$0xff]
        %v987 = vld [vmem:[%s12] sm:$0x1]
        %v989 = vsel %vm641, %v982, 0
        %991 = vmatprep.subr.mxu0 0.0
        %992 = vmatpush1.msra.mxu0 %v983
        %993 = vmatprep.subr.mxu0 0.0
        %994 = vmatpush1.msra.mxu0 %v984
        %995 = vmatprep.subr.mxu0 0.0
        %996 = vmatpush1.msra.mxu0 %v985
        %997 = vmatprep.subr.mxu0 0.0
        %998 = vmatpush1.msra.mxu0 %v986
        %999 = vmatprep.subr.mxu0 0.0
        %1000 = vmatpush1.msra.mxu0 0.0
        %1001 = vmatprep.subr.mxu0 0.0
        %1002 = vmatpush1.msra.mxu0 0.0
        %1003 = vmatprep.subr.mxu0 0.0
        %1004 = vmatpush1.msra.mxu0 0.0
        %1005 = vmatprep.subr.mxu0 0.0
        %1006 = vmatpush1.msra.mxu0 0.0
        %1007 = vmatprep.subr.mxu0 0.0
        %1008 = vmatpush1.msra.mxu0 0.0
        %1009 = vmatprep.subr.mxu0 0.0
        %1010 = vmatpush1.msra.mxu0 0.0
        %1011 = vmatprep.subr.mxu0 0.0
        %1012 = vmatpush1.msra.mxu0 0.0
        %1013 = vmatprep.subr.mxu0 0.0
        %1014 = vmatpush1.msra.mxu0 0.0
        %1015 = vmatprep.subr.mxu0 0.0
        %1016 = vmatpush1.msra.mxu0 0.0
        %1017 = vmatprep.subr.mxu0 0.0
        %1018 = vmatpush1.msra.mxu0 0.0
        %1019 = vmatprep.subr.mxu0 0.0
        %1020 = vmatpush1.msra.mxu0 0.0
        %1021 = vmatprep.subr.mxu0 0.0
        %1022 = vmatpush1.msra.mxu0 0.0
        %1023 = vmatprep.subr.mxu0 0.0
        %1024 = vmatpush1.msra.mxu0 0.0
        %1025 = vmatprep.subr.mxu0 0.0
        %1026 = vmatpush1.msra.mxu0 0.0
        %1027 = vmatprep.subr.mxu0 0.0
        %1028 = vmatpush1.msra.mxu0 0.0
        %1029 = vmatprep.subr.mxu0 0.0
        %1030 = vmatpush1.msra.mxu0 0.0
        %1031 = vmatprep.subr.mxu0 0.0
        %1032 = vmatpush1.msra.mxu0 0.0
        %1033 = vmatprep.subr.mxu0 0.0
        %1034 = vmatpush1.msra.mxu0 0.0
        %1035 = vmatprep.subr.mxu0 0.0
        %1036 = vmatpush1.msra.mxu0 0.0
        %1037 = vmatprep.subr.mxu0 0.0
        %1038 = vmatpush1.msra.mxu0 0.0
        %1039 = vmatprep.subr.mxu0 0.0
        %1040 = vmatpush1.msra.mxu0 0.0
        %1041 = vmatprep.subr.mxu0 0.0
        %1042 = vmatpush1.msra.mxu0 0.0
        %1043 = vmatprep.subr.mxu0 0.0
        %1044 = vmatpush1.msra.mxu0 0.0
        %1045 = vmatprep.subr.mxu0 0.0
        %1046 = vmatpush1.msra.mxu0 0.0
        %1047 = vmatprep.subr.mxu0 0.0
        %1048 = vmatpush1.msra.mxu0 0.0
        %1049 = vmatprep.subr.mxu0 0.0
        %1050 = vmatpush1.msra.mxu0 0.0
        %1051 = vmatprep.subr.mxu0 0.0
        %1052 = vmatpush1.msra.mxu0 0.0
        %1053 = vmatprep.subr.mxu0 0.0
        %1054 = vmatpush1.msra.mxu0 0.0
        %1055 = vmatprep.mubr.f32.mxu0 0.0
        %1056 = vmatmul.mubr.f32.gmra.mrb[0].mxu0 %v989
        %v1057 = vpop.f32.mrb[0].mxu0
        %v1058 = vadd.f32 %v987, %v1057
        %v1059 = vpop.f32.mrb[0].mxu0
        %1060 = vdwg.mxu0
        %v1061 = vmax.f32 %v1058, 0.0
        %v1062 = vld [vmem:[%s13] sm:$0xff]
        %v1063 = vld [vmem:[%s13 + $0x8] sm:$0xff]
        %v1064 = vld [vmem:[%s13 + $0x10] sm:$0xff]
        %v1065 = vld [vmem:[%s13 + $0x18] sm:$0xff]
        %v1066 = vld [vmem:[%s13 + $0x20] sm:$0xff]
        %v1067 = vld [vmem:[%s13 + $0x28] sm:$0xff]
        %v1068 = vld [vmem:[%s13 + $0x30] sm:$0xff]
        %v1069 = vld [vmem:[%s13 + $0x38] sm:$0xff]
        %v1070 = vld [vmem:[%s14] sm:$0x1]
        %v1072 = vsel %vm731, %v1061, 0
        %1074 = vmatprep.subr.mxu0 0.0
        %1075 = vmatpush1.msra.mxu0 %v1062
        %1076 = vmatprep.subr.mxu0 0.0
        %1077 = vmatpush1.msra.mxu0 %v1063
        %1078 = vmatprep.subr.mxu0 0.0
        %1079 = vmatpush1.msra.mxu0 %v1064
        %1080 = vmatprep.subr.mxu0 0.0
        %1081 = vmatpush1.msra.mxu0 %v1065
        %1082 = vmatprep.subr.mxu0 0.0
        %1083 = vmatpush1.msra.mxu0 %v1066
        %1084 = vmatprep.subr.mxu0 0.0
        %1085 = vmatpush1.msra.mxu0 %v1067
        %1086 = vmatprep.subr.mxu0 0.0
        %1087 = vmatpush1.msra.mxu0 %v1068
        %1088 = vmatprep.subr.mxu0 0.0
        %1089 = vmatpush1.msra.mxu0 %v1069
        %1090 = vmatprep.subr.mxu0 0.0
        %1091 = vmatpush1.msra.mxu0 0.0
        %1092 = vmatprep.subr.mxu0 0.0
        %1093 = vmatpush1.msra.mxu0 0.0
        %1094 = vmatprep.subr.mxu0 0.0
        %1095 = vmatpush1.msra.mxu0 0.0
        %1096 = vmatprep.subr.mxu0 0.0
        %1097 = vmatpush1.msra.mxu0 0.0
        %1098 = vmatprep.subr.mxu0 0.0
        %1099 = vmatpush1.msra.mxu0 0.0
        %1100 = vmatprep.subr.mxu0 0.0
        %1101 = vmatpush1.msra.mxu0 0.0
        %1102 = vmatprep.subr.mxu0 0.0
        %1103 = vmatpush1.msra.mxu0 0.0
        %1104 = vmatprep.subr.mxu0 0.0
        %1105 = vmatpush1.msra.mxu0 0.0
        %1106 = vmatprep.subr.mxu0 0.0
        %1107 = vmatpush1.msra.mxu0 0.0
        %1108 = vmatprep.subr.mxu0 0.0
        %1109 = vmatpush1.msra.mxu0 0.0
        %1110 = vmatprep.subr.mxu0 0.0
        %1111 = vmatpush1.msra.mxu0 0.0
        %1112 = vmatprep.subr.mxu0 0.0
        %1113 = vmatpush1.msra.mxu0 0.0
        %1114 = vmatprep.subr.mxu0 0.0
        %1115 = vmatpush1.msra.mxu0 0.0
        %1116 = vmatprep.subr.mxu0 0.0
        %1117 = vmatpush1.msra.mxu0 0.0
        %1118 = vmatprep.subr.mxu0 0.0
        %1119 = vmatpush1.msra.mxu0 0.0
        %1120 = vmatprep.subr.mxu0 0.0
        %1121 = vmatpush1.msra.mxu0 0.0
        %1122 = vmatprep.subr.mxu0 0.0
        %1123 = vmatpush1.msra.mxu0 0.0
        %1124 = vmatprep.subr.mxu0 0.0
        %1125 = vmatpush1.msra.mxu0 0.0
        %1126 = vmatprep.subr.mxu0 0.0
        %1127 = vmatpush1.msra.mxu0 0.0
        %1128 = vmatprep.subr.mxu0 0.0
        %1129 = vmatpush1.msra.mxu0 0.0
        %1130 = vmatprep.subr.mxu0 0.0
        %1131 = vmatpush1.msra.mxu0 0.0
        %1132 = vmatprep.subr.mxu0 0.0
        %1133 = vmatpush1.msra.mxu0 0.0
        %1134 = vmatprep.subr.mxu0 0.0
        %1135 = vmatpush1.msra.mxu0 0.0
        %1136 = vmatprep.subr.mxu0 0.0
        %1137 = vmatpush1.msra.mxu0 0.0
        %1138 = vmatprep.mubr.f32.mxu0 0.0
        %1139 = vmatmul.mubr.f32.gmra.mrb[0].mxu0 %v1072
        %v1140 = vpop.f32.mrb[0].mxu0
        %v1141 = vadd.f32 %v1070, %v1140
        %v1142 = vpop.f32.mrb[0].mxu0
        %1143 = vdwg.mxu0
        %v1145 = vsel %vm641, %v1141, 0
        %v1148 = vsel %vm641, %v802, 0
        %1150 = vmatprep.subr.mxu0 0.0
        %1151 = vmatpush1.xpose.msra.mxu0 %v1148
        %1152 = vmatprep.subr.mxu0 0.0
        %1153 = vmatpush1.xpose.msra.mxu0 0.0
        %1154 = vmatprep.subr.mxu0 0.0
        %1155 = vmatpush1.xpose.msra.mxu0 0.0
        %1156 = vmatprep.subr.mxu0 0.0
        %1157 = vmatpush1.xpose.msra.mxu0 0.0
        %1158 = vmatprep.subr.mxu0 0.0
        %1159 = vmatpush1.xpose.msra.mxu0 0.0
        %1160 = vmatprep.subr.mxu0 0.0
        %1161 = vmatpush1.xpose.msra.mxu0 0.0
        %1162 = vmatprep.subr.mxu0 0.0
        %1163 = vmatpush1.xpose.msra.mxu0 0.0
        %1164 = vmatprep.subr.mxu0 0.0
        %1165 = vmatpush1.xpose.msra.mxu0 0.0
        %1166 = vmatprep.subr.mxu0 0.0
        %1167 = vmatpush1.xpose.msra.mxu0 0.0
        %1168 = vmatprep.subr.mxu0 0.0
        %1169 = vmatpush1.xpose.msra.mxu0 0.0
        %1170 = vmatprep.subr.mxu0 0.0
        %1171 = vmatpush1.xpose.msra.mxu0 0.0
        %1172 = vmatprep.subr.mxu0 0.0
        %1173 = vmatpush1.xpose.msra.mxu0 0.0
        %1174 = vmatprep.subr.mxu0 0.0
        %1175 = vmatpush1.xpose.msra.mxu0 0.0
        %1176 = vmatprep.subr.mxu0 0.0
        %1177 = vmatpush1.xpose.msra.mxu0 0.0
        %1178 = vmatprep.subr.mxu0 0.0
        %1179 = vmatpush1.xpose.msra.mxu0 0.0
        %1180 = vmatprep.subr.mxu0 0.0
        %1181 = vmatpush1.xpose.msra.mxu0 0.0
        %1182 = vmatprep.subr.mxu0 0.0
        %1183 = vmatpush1.xpose.msra.mxu0 0.0
        %1184 = vmatprep.subr.mxu0 0.0
        %1185 = vmatpush1.xpose.msra.mxu0 0.0
        %1186 = vmatprep.subr.mxu0 0.0
        %1187 = vmatpush1.xpose.msra.mxu0 0.0
        %1188 = vmatprep.subr.mxu0 0.0
        %1189 = vmatpush1.xpose.msra.mxu0 0.0
        %1190 = vmatprep.subr.mxu0 0.0
        %1191 = vmatpush1.xpose.msra.mxu0 0.0
        %1192 = vmatprep.subr.mxu0 0.0
        %1193 = vmatpush1.xpose.msra.mxu0 0.0
        %1194 = vmatprep.subr.mxu0 0.0
        %1195 = vmatpush1.xpose.msra.mxu0 0.0
        %1196 = vmatprep.subr.mxu0 0.0
        %1197 = vmatpush1.xpose.msra.mxu0 0.0
        %1198 = vmatprep.subr.mxu0 0.0
        %1199 = vmatpush1.xpose.msra.mxu0 0.0
        %1200 = vmatprep.subr.mxu0 0.0
        %1201 = vmatpush1.xpose.msra.mxu0 0.0
        %1202 = vmatprep.subr.mxu0 0.0
        %1203 = vmatpush1.xpose.msra.mxu0 0.0
        %1204 = vmatprep.subr.mxu0 0.0
        %1205 = vmatpush1.xpose.msra.mxu0 0.0
        %1206 = vmatprep.subr.mxu0 0.0
        %1207 = vmatpush1.xpose.msra.mxu0 0.0
        %1208 = vmatprep.subr.mxu0 0.0
        %1209 = vmatpush1.xpose.msra.mxu0 0.0
        %1210 = vmatprep.subr.mxu0 0.0
        %1211 = vmatpush1.xpose.msra.mxu0 0.0
        %1212 = vmatprep.subr.mxu0 0.0
        %1213 = vmatpush1.xpose.msra.mxu0 0.0
        %1214 = vmatprep.mubr.f32.mxu0 0.0
        %1215 = vmatmul.mubr.f32.gmra.mrb[0].mxu0 %v1145
        %v1216 = vpop.f32.mrb[0].mxu0
        %v1217 = vadd.f32 0.0, %v1216
        %v1218 = vpop.f32.mrb[0].mxu0
        %1219 = vdwg.mxu0
        %v1220 = vld [vmem:[%s606] sm:$0x1]
        %vm1221 = vcmp.eq.s32.totalorder %v1220, 0
        %v1222 = vsel %vm1221, -inf, %v1217
        %vm1223 = vcmask 57344
        %v1224 = vsel %vm1223, %v1222, -inf
        %1225 = vmax.xlane.f32.xlu0 %v1224
        %v1226 = vpop.xlane.xlu0 %1225
        %v1227 = vsub.f32 %v1222, %v1226
        %v1228 = vmul.f32 %v1227, 1.442695
        %v1229 = vpow.pop %v1228
        %v1230 = vsel %vm1223, %v1229, 0.0
        %1231 = vadd.xlane.f32.xlu0 %v1230
        %v1232 = vpop.xlane.xlu0 %1231
        %v1233 = vrcp.pop %v1232
        %v1234 = vmul.f32 %v1229, %v1233
        %1235 = vst.msk [vmem:[%s603] sm:$0x1] %vm1223, %v1234
        %vm1236 = vcmask 64512
        %v1238 = vsel %vm1236, %v1234, 0
        %1240 = vmatprep.subr.mxu0 0.0
        %1241 = vmatpush1.msra.mxu0 %v972
        %1242 = vmatprep.subr.mxu0 0.0
        %1243 = vmatpush1.msra.mxu0 0.0
        %1244 = vmatprep.subr.mxu0 0.0
        %1245 = vmatpush1.msra.mxu0 0.0
        %1246 = vmatprep.subr.mxu0 0.0
        %1247 = vmatpush1.msra.mxu0 0.0
        %1248 = vmatprep.subr.mxu0 0.0
        %1249 = vmatpush1.msra.mxu0 0.0
        %1250 = vmatprep.subr.mxu0 0.0
        %1251 = vmatpush1.msra.mxu0 0.0
        %1252 = vmatprep.subr.mxu0 0.0
        %1253 = vmatpush1.msra.mxu0 0.0
        %1254 = vmatprep.subr.mxu0 0.0
        %1255 = vmatpush1.msra.mxu0 0.0
        %1256 = vmatprep.subr.mxu0 0.0
        %1257 = vmatpush1.msra.mxu0 0.0
        %1258 = vmatprep.subr.mxu0 0.0
        %1259 = vmatpush1.msra.mxu0 0.0
        %1260 = vmatprep.subr.mxu0 0.0
        %1261 = vmatpush1.msra.mxu0 0.0
        %1262 = vmatprep.subr.mxu0 0.0
        %1263 = vmatpush1.msra.mxu0 0.0
        %1264 = vmatprep.subr.mxu0 0.0
        %1265 = vmatpush1.msra.mxu0 0.0
        %1266 = vmatprep.subr.mxu0 0.0
        %1267 = vmatpush1.msra.mxu0 0.0
        %1268 = vmatprep.subr.mxu0 0.0
        %1269 = vmatpush1.msra.mxu0 0.0
        %1270 = vmatprep.subr.mxu0 0.0
        %1271 = vmatpush1.msra.mxu0 0.0
        %1272 = vmatprep.subr.mxu0 0.0
        %1273 = vmatpush1.msra.mxu0 0.0
        %1274 = vmatprep.subr.mxu0 0.0
        %1275 = vmatpush1.msra.mxu0 0.0
        %1276 = vmatprep.subr.mxu0 0.0
        %1277 = vmatpush1.msra.mxu0 0.0
        %1278 = vmatprep.subr.mxu0 0.0
        %1279 = vmatpush1.msra.mxu0 0.0
        %1280 = vmatprep.subr.mxu0 0.0
        %1281 = vmatpush1.msra.mxu0 0.0
        %1282 = vmatprep.subr.mxu0 0.0
        %1283 = vmatpush1.msra.mxu0 0.0
        %1284 = vmatprep.subr.mxu0 0.0
        %1285 = vmatpush1.msra.mxu0 0.0
        %1286 = vmatprep.subr.mxu0 0.0
        %1287 = vmatpush1.msra.mxu0 0.0
        %1288 = vmatprep.subr.mxu0 0.0
        %1289 = vmatpush1.msra.mxu0 0.0
        %1290 = vmatprep.subr.mxu0 0.0
        %1291 = vmatpush1.msra.mxu0 0.0
        %1292 = vmatprep.subr.mxu0 0.0
        %1293 = vmatpush1.msra.mxu0 0.0
        %1294 = vmatprep.subr.mxu0 0.0
        %1295 = vmatpush1.msra.mxu0 0.0
        %1296 = vmatprep.subr.mxu0 0.0
        %1297 = vmatpush1.msra.mxu0 0.0
        %1298 = vmatprep.subr.mxu0 0.0
        %1299 = vmatpush1.msra.mxu0 0.0
        %1300 = vmatprep.subr.mxu0 0.0
        %1301 = vmatpush1.msra.mxu0 0.0
        %1302 = vmatprep.subr.mxu0 0.0
        %1303 = vmatpush1.msra.mxu0 0.0
        %1304 = vmatprep.mubr.f32.mxu0 0.0
        %1305 = vmatmul.mubr.f32.gmra.mrb[0].mxu0 %v1238
        %v1306 = vpop.f32.mrb[0].mxu0
        %v1307 = vadd.f32 0.0, %v1306
        %v1308 = vpop.f32.mrb[0].mxu0
        %1309 = vdwg.mxu0
        %v1310 = vld [vmem:[%s15] sm:$0xff]
        %v1311 = vld [vmem:[%s15 + $0x8] sm:$0xff]
        %v1312 = vld [vmem:[%s15 + $0x10] sm:$0xff]
        %v1313 = vld [vmem:[%s15 + $0x18] sm:$0xff]
        %v1314 = vld [vmem:[%s16] sm:$0x1]
        %v1316 = vsel %vm641, %v1307, 0
        %1318 = vmatprep.subr.mxu0 0.0
        %1319 = vmatpush1.msra.mxu0 %v1310
        %1320 = vmatprep.subr.mxu0 0.0
        %1321 = vmatpush1.msra.mxu0 %v1311
        %1322 = vmatprep.subr.mxu0 0.0
        %1323 = vmatpush1.msra.mxu0 %v1312
        %1324 = vmatprep.subr.mxu0 0.0
        %1325 = vmatpush1.msra.mxu0 %v1313
        %1326 = vmatprep.subr.mxu0 0.0
        %1327 = vmatpush1.msra.mxu0 0.0
        %1328 = vmatprep.subr.mxu0 0.0
        %1329 = vmatpush1.msra.mxu0 0.0
        %1330 = vmatprep.subr.mxu0 0.0
        %1331 = vmatpush1.msra.mxu0 0.0
        %1332 = vmatprep.subr.mxu0 0.0
        %1333 = vmatpush1.msra.mxu0 0.0
        %1334 = vmatprep.subr.mxu0 0.0
        %1335 = vmatpush1.msra.mxu0 0.0
        %1336 = vmatprep.subr.mxu0 0.0
        %1337 = vmatpush1.msra.mxu0 0.0
        %1338 = vmatprep.subr.mxu0 0.0
        %1339 = vmatpush1.msra.mxu0 0.0
        %1340 = vmatprep.subr.mxu0 0.0
        %1341 = vmatpush1.msra.mxu0 0.0
        %1342 = vmatprep.subr.mxu0 0.0
        %1343 = vmatpush1.msra.mxu0 0.0
        %1344 = vmatprep.subr.mxu0 0.0
        %1345 = vmatpush1.msra.mxu0 0.0
        %1346 = vmatprep.subr.mxu0 0.0
        %1347 = vmatpush1.msra.mxu0 0.0
        %1348 = vmatprep.subr.mxu0 0.0
        %1349 = vmatpush1.msra.mxu0 0.0
        %1350 = vmatprep.subr.mxu0 0.0
        %1351 = vmatpush1.msra.mxu0 0.0
        %1352 = vmatprep.subr.mxu0 0.0
        %1353 = vmatpush1.msra.mxu0 0.0
        %1354 = vmatprep.subr.mxu0 0.0
        %1355 = vmatpush1.msra.mxu0 0.0
        %1356 = vmatprep.subr.mxu0 0.0
        %1357 = vmatpush1.msra.mxu0 0.0
        %1358 = vmatprep.subr.mxu0 0.0
        %1359 = vmatpush1.msra.mxu0 0.0
        %1360 = vmatprep.subr.mxu0 0.0
        %1361 = vmatpush1.msra.mxu0 0.0
        %1362 = vmatprep.subr.mxu0 0.0
        %1363 = vmatpush1.msra.mxu0 0.0
        %1364 = vmatprep.subr.mxu0 0.0
        %1365 = vmatpush1.msra.mxu0 0.0
        %1366 = vmatprep.subr.mxu0 0.0
        %1367 = vmatpush1.msra.mxu0 0.0
        %1368 = vmatprep.subr.mxu0 0.0
        %1369 = vmatpush1.msra.mxu0 0.0
        %1370 = vmatprep.subr.mxu0 0.0
        %1371 = vmatpush1.msra.mxu0 0.0
        %1372 = vmatprep.subr.mxu0 0.0
        %1373 = vmatpush1.msra.mxu0 0.0
        %1374 = vmatprep.subr.mxu0 0.0
        %1375 = vmatpush1.msra.mxu0 0.0
        %1376 = vmatprep.subr.mxu0 0.0
        %1377 = vmatpush1.msra.mxu0 0.0
        %1378 = vmatprep.subr.mxu0 0.0
        %1379 = vmatpush1.msra.mxu0 0.0
        %1380 = vmatprep.subr.mxu0 0.0
        %1381 = vmatpush1.msra.mxu0 0.0
        %1382 = vmatprep.mubr.f32.mxu0 0.0
        %1383 = vmatmul.mubr.f32.gmra.mrb[0].mxu0 %v1316
        %v1384 = vpop.f32.mrb[0].mxu0
        %v1385 = vadd.f32 %v1314, %v1384
        %v1386 = vpop.f32.mrb[0].mxu0
        %1387 = vdwg.mxu0
        %v1388 = vmax.f32 %v1385, 0.0
        %v1389 = vld [vmem:[%s17] sm:$0xff]
        %v1390 = vld [vmem:[%s17 + $0x8] sm:$0xff]
        %v1391 = vld [vmem:[%s18] sm:$0x1]
        %vm1392 = vcmask 130048
        %v1394 = vsel %vm1392, %v1388, 0
        %1396 = vmatprep.subr.mxu0 0.0
        %1397 = vmatpush1.msra.mxu0 %v1389
        %1398 = vmatprep.subr.mxu0 0.0
        %1399 = vmatpush1.msra.mxu0 %v1390
        %1400 = vmatprep.subr.mxu0 0.0
        %1401 = vmatpush1.msra.mxu0 0.0
        %1402 = vmatprep.subr.mxu0 0.0
        %1403 = vmatpush1.msra.mxu0 0.0
        %1404 = vmatprep.subr.mxu0 0.0
        %1405 = vmatpush1.msra.mxu0 0.0
        %1406 = vmatprep.subr.mxu0 0.0
        %1407 = vmatpush1.msra.mxu0 0.0
        %1408 = vmatprep.subr.mxu0 0.0
        %1409 = vmatpush1.msra.mxu0 0.0
        %1410 = vmatprep.subr.mxu0 0.0
        %1411 = vmatpush1.msra.mxu0 0.0
        %1412 = vmatprep.subr.mxu0 0.0
        %1413 = vmatpush1.msra.mxu0 0.0
        %1414 = vmatprep.subr.mxu0 0.0
        %1415 = vmatpush1.msra.mxu0 0.0
        %1416 = vmatprep.subr.mxu0 0.0
        %1417 = vmatpush1.msra.mxu0 0.0
        %1418 = vmatprep.subr.mxu0 0.0
        %1419 = vmatpush1.msra.mxu0 0.0
        %1420 = vmatprep.subr.mxu0 0.0
        %1421 = vmatpush1.msra.mxu0 0.0
        %1422 = vmatprep.subr.mxu0 0.0
        %1423 = vmatpush1.msra.mxu0 0.0
        %1424 = vmatprep.subr.mxu0 0.0
        %1425 = vmatpush1.msra.mxu0 0.0
        %1426 = vmatprep.subr.mxu0 0.0
        %1427 = vmatpush1.msra.mxu0 0.0
        %1428 = vmatprep.subr.mxu0 0.0
        %1429 = vmatpush1.msra.mxu0 0.0
        %1430 = vmatprep.subr.mxu0 0.0
        %1431 = vmatpush1.msra.mxu0 0.0
        %1432 = vmatprep.subr.mxu0 0.0
        %1433 = vmatpush1.msra.mxu0 0.0
        %1434 = vmatprep.subr.mxu0 0.0
        %1435 = vmatpush1.msra.mxu0 0.0
        %1436 = vmatprep.subr.mxu0 0.0
        %1437 = vmatpush1.msra.mxu0 0.0
        %1438 = vmatprep.subr.mxu0 0.0
        %1439 = vmatpush1.msra.mxu0 0.0
        %1440 = vmatprep.subr.mxu0 0.0
        %1441 = vmatpush1.msra.mxu0 0.0
        %1442 = vmatprep.subr.mxu0 0.0
        %1443 = vmatpush1.msra.mxu0 0.0
        %1444 = vmatprep.subr.mxu0 0.0
        %1445 = vmatpush1.msra.mxu0 0.0
        %1446 = vmatprep.subr.mxu0 0.0
        %1447 = vmatpush1.msra.mxu0 0.0
        %1448 = vmatprep.subr.mxu0 0.0
        %1449 = vmatpush1.msra.mxu0 0.0
        %1450 = vmatprep.subr.mxu0 0.0
        %1451 = vmatpush1.msra.mxu0 0.0
        %1452 = vmatprep.subr.mxu0 0.0
        %1453 = vmatpush1.msra.mxu0 0.0
        %1454 = vmatprep.subr.mxu0 0.0
        %1455 = vmatpush1.msra.mxu0 0.0
        %1456 = vmatprep.subr.mxu0 0.0
        %1457 = vmatpush1.msra.mxu0 0.0
        %1458 = vmatprep.subr.mxu0 0.0
        %1459 = vmatpush1.msra.mxu0 0.0
        %1460 = vmatprep.mubr.f32.mxu0 0.0
        %1461 = vmatmul.mubr.f32.gmra.mrb[0].mxu0 %v1394
        %v1462 = vpop.f32.mrb[0].mxu0
        %v1463 = vadd.f32 %v1391, %v1462
        %v1464 = vpop.f32.mrb[0].mxu0
        %1465 = vdwg.mxu0
        %1466 = vst [vmem:[%s609] sm:$0x1] %v1463
        %p1467 = scmp.lt.s32.totalorder %s41, 7
        %s1468 = scalar_select %p1467, %s41, 7
        %s1469 = scalar_lea.vmem %s19, %s1468
        %s1470 = sand.u32 %s458, 1
        %s1471 = scalar_lea.sflag [#allocation6], %s1470
        %s1472 = sand.u32 %s458, 1
        %s1473 = scalar_lea.vmem [#allocation5], %s1472
        // Predicated region
        $region100: #{complex_attention_forward.1} parent=91 // pred_check
          %p1474 = pneg %p442
        $region101: #{complex_attention_forward.1} parent=91 // pred_check_branch
          %1476 = sbr.rel (%p1474) target = $region103
        $region102: #{complex_attention_forward.1} parent=91 // pred_region
          _
        $region103: #{complex_attention_forward.1} parent=91 // pred_fallthru
          _
        // Predicated region
        $region104: #{complex_attention_forward.1} parent=91 // pred_check
          %p1477 = pneg %p468
        $region105: #{complex_attention_forward.1} parent=91 // pred_check_branch
          %1479 = sbr.rel (%p1477) target = $region107
        $region106: #{complex_attention_forward.1} parent=91 // pred_region
          %s1481 = ssub.s32 16, 16
          %1482 = vsyncadd %s1471, %s1481
          %s1483 = smul.addr %s41, 16
          %s1484 = scalar_lea.hbm %s20, %s1483
          %s1486 = sshll.u32 %s1473, 4
          %s1487 = int_to_ptr.vmem [resolvable:$true] %s1486
          %1489 = dma.vmem_to_hbm [thread:$0]  %s1487, 16, %s1484, %s1471
        $region107: #{complex_attention_forward.1} parent=91 // pred_fallthru
          _
      $region92: #{complex_attention_forward.1} parent=5 // pred_fallthru
        _
      %p1490 = scmp.le.s32.totalorder 2, %s36
      // Predicated region
      $region108: #{complex_attention_forward.1} parent=5 // pred_check
        %p1491 = pneg %p1490
      $region109: #{complex_attention_forward.1} parent=5 // pred_check_branch
        %1493 = sbr.rel (%p1491) target = $region111
      $region110: #{complex_attention_forward.1} parent=5 // pred_region
        %s1494 = ssub.s32 %s36, 2
        // Predicated region
        $region112: #{complex_attention_forward.1} parent=110 // pred_check
          %p1495 = pneg %p448
        $region113: #{complex_attention_forward.1} parent=110 // pred_check_branch
          %1497 = sbr.rel (%p1495) target = $region115
        $region114: #{complex_attention_forward.1} parent=110 // pred_region
          %p1498 = scmp.lt.s32.totalorder %s42, 7
          %s1499 = scalar_select %p1498, %s42, 7
          %s1500 = scalar_lea.vmem %s19, %s1499
        $region115: #{complex_attention_forward.1} parent=110 // pred_fallthru
          _
        // Predicated region
        $region116: #{complex_attention_forward.1} parent=110 // pred_check
          %p1501 = pneg %p474
        $region117: #{complex_attention_forward.1} parent=110 // pred_check_branch
          %1503 = sbr.rel (%p1501) target = $region119
        $region118: #{complex_attention_forward.1} parent=110 // pred_region
          %s1504 = sand.u32 %s459, 1
          %s1505 = scalar_lea.sflag [#allocation6], %s1504
          %s1506 = sand.u32 %s459, 1
          %s1507 = scalar_lea.vmem [#allocation5], %s1506
          %1508 = dma.done %s1505, 16
        $region119: #{complex_attention_forward.1} parent=110 // pred_fallthru
          _
      $region111: #{complex_attention_forward.1} parent=5 // pred_fallthru
        _
    $region6: #{complex_attention_forward.1} parent=1 // loop_footer
      %s40 = sadd.s32 1, %s36
    $region7: #{complex_attention_forward.1} parent=1 // loop_footer_branch
      %35 = sbr.rel target = $region3
    $region8: #{complex_attention_forward.1} parent=1 // loop_exit
      _
    %1509 = vsyncpa [#allocation6], 1
    %s1510 = scalar_lea.sflag [#allocation6], 1
    %1511 = vsyncpa %s1510, 1

</llo_original>
